<compile_context>
chip_gen: v7x
topology: tpu7x:2x2x1
jax: 0.10.0
libtpu: 0.0.40
codegen_flags: <defaults>
</compile_context>

<pallas_src>
import jax
import jax.numpy as jnp
from jax.experimental import pallas as pl
from jax.experimental.pallas import tpu as pltpu

BF16_MATMUL = True  # f32 fallback flag: set False to run every matmul in f32.


def _make_lstm_kernel(num_layers: int, seq_len: int, batch: int, hidden: int,
                      bf16_matmul: bool):
    """Builds a kernel closed over the static layer/time/batch structure."""
    L, T, B, H = num_layers, seq_len, batch, hidden
    mm_dtype = jnp.bfloat16 if bf16_matmul else jnp.float32

    def kernel(x_ref, h0_ref, c0_ref, *refs):
        # refs = [w_ih_0, w_hh_0, b_0, ..., w_ih_{L-1}, w_hh_{L-1}, b_{L-1},
        #         w_lin, b_lin,                      (inputs)
        #         out_ref,                           (output)
        #         seq_ref]                           (VMEM scratch)
        layer_refs = refs[: 3 * L]
        w_lin_ref = refs[3 * L]
        b_lin_ref = refs[3 * L + 1]
        out_ref = refs[3 * L + 2]
        seq_ref = refs[3 * L + 3]    # (T*B, H) mm_dtype: h_t outputs feeding next layer

        # Hoisted fused-activation constants.  sigmoid(x) = 0.5*tanh(0.5*x) + 0.5, so one
        # tanh over the full (B, 4H) gate vreg covers all four gates; the g-gate lanes
        # (2H:3H in kernel gate order f,i,g,o) keep scale=1 / offset=0.  Built directly at
        # (B, 4H) so no per-step broadcast_in_dim is re-emitted (JAX does not CSE it).
        lane = jax.lax.broadcasted_iota(jnp.int32, (B, 4 * H), 1)
        is_g = (lane >= 2 * H) & (lane < 3 * H)
        scale = jnp.where(is_g, 1.0, 0.5).astype(jnp.float32)    # pre- and post-scale
        offset = jnp.where(is_g, 0.0, 0.5).astype(jnp.float32)

        h_last = None
        for l in range(L):
            w_ih = layer_refs[3 * l][...]      # (in_dim, 4H) mm_dtype
            w_hh = layer_refs[3 * l + 1][...]  # (H, 4H)      mm_dtype
            b = layer_refs[3 * l + 2][...]     # (1, 4H)      f32 (= bias_ih + bias_hh)

            # Hoisted input projection + bias for ALL timesteps: one batched bf16 MXU
            # matmul with f32 accumulation, kept live in vregs (8 vregs at these shapes).
            if l == 0:
                inp_flat = x_ref[...]          # (T*B, I)  mm_dtype
            else:
                inp_flat = seq_ref[...]        # (T*B, H)  mm_dtype
            proj = jnp.dot(inp_flat, w_ih, preferred_element_type=jnp.float32) + b

            h = h0_ref[l]                      # (B, H) f32
            c = c0_ref[l]                      # (B, H) f32

            for t in range(T):
                # Only one MXU push on the serial h->h critical path per step.
                gates = proj[t * B:(t + 1) * B, :] + jnp.dot(
                    h.astype(mm_dtype), w_hh, preferred_element_type=jnp.float32)

                # Single transcendental pass for all four gates (kernel order f,i,g,o).
                acts = jnp.tanh(gates * scale) * scale + offset
                f_g = acts[:, 0 * H:1 * H]     # lane-aligned with c (no rotate)
                i_g = acts[:, 1 * H:2 * H]
                g_g = acts[:, 2 * H:3 * H]
                o_g = acts[:, 3 * H:4 * H]

                c = f_g * c + i_g * g_g
                h = o_g * jnp.tanh(c)

                if l < L - 1:
                    # Stream this layer's output sequence (already in matmul dtype) to
                    # scratch for the next layer's batched projection.
                    seq_ref[t * B:(t + 1) * B, :] = h.astype(mm_dtype)
            h_last = h                         # == out[:, -1, :] for the last layer

        logits = (
            jnp.dot(h_last, w_lin_ref[...], preferred_element_type=jnp.float32)
            + b_lin_ref[...]
        )
        out_ref[...] = jnp.maximum(logits, 0.0)

    return kernel


def _reorder_gates(w, H):
    """Permute last-axis gate blocks from PyTorch order (i,f,g,o) to kernel order (f,i,g,o)."""
    i = w[..., 0 * H:1 * H]
    f = w[..., 1 * H:2 * H]
    g = w[..., 2 * H:3 * H]
    o = w[..., 3 * H:4 * H]
    return jnp.concatenate([f, i, g, o], axis=-1)


def multivariable_lstm_forward(x, hidden, cell, params, bf16_matmul=BF16_MATMUL):
    """Pallas forward: relu(linear(lstm(x, (hidden, cell)) last step))."""
    B, T, I = x.shape
    L, _, H = hidden.shape
    F = params["b_lin"].shape[-1]
    mm_dtype = jnp.bfloat16 if bf16_matmul else jnp.float32

    # Wrapper-side layout plumbing (one-off XLA work): (B, T, I) -> (T, B, I) -> (T*B, I)
    # so per-timestep rows are contiguous sublane blocks; gate columns reordered once;
    # matmul operands pre-cast to bf16 (halves the weight/input DMA).
    x_flat = jnp.transpose(x, (1, 0, 2)).reshape(T * B, I).astype(mm_dtype)

    inputs = [x_flat, hidden, cell]
    for l in range(L):
        inputs += [
            _reorder_gates(params["w_ih"][l], H).astype(mm_dtype),
            _reorder_gates(params["w_hh"][l], H).astype(mm_dtype),
            _reorder_gates(params["b"][l], H),           # bias stays f32
        ]
    inputs += [params["w_lin"], params["b_lin"]]          # final linear stays f32

    kernel = _make_lstm_kernel(L, T, B, H, bf16_matmul)
    vmem = pl.BlockSpec(memory_space=pltpu.MemorySpace.VMEM)
    return pl.pallas_call(
        kernel,
        out_shape=jax.ShapeDtypeStruct((B, F), jnp.float32),
        in_specs=[vmem] * len(inputs),
        out_specs=vmem,
        scratch_shapes=[
            pltpu.VMEM((T * B, H), mm_dtype),   # per-layer output sequence
        ],
    )(*inputs)


def init_params(key, input_size, hidden_size, num_layers, future_steps):
    """Deterministic PyTorch-style uniform init; weights stored pre-transposed,
    gate order = PyTorch's (i, f, g, o)."""
    k = 1.0 / jnp.sqrt(jnp.float32(hidden_size))
    params = {"w_ih": [], "w_hh": [], "b": []}
    for l in range(num_layers):
        in_dim = input_size if l == 0 else hidden_size
        key, k1, k2, k3, k4 = jax.random.split(key, 5)
        params["w_ih"].append(
            jax.random.uniform(k1, (in_dim, 4 * hidden_size), jnp.float32, -k, k))
        params["w_hh"].append(
            jax.random.uniform(k2, (hidden_size, 4 * hidden_size), jnp.float32, -k, k))
        b_ih = jax.random.uniform(k3, (1, 4 * hidden_size), jnp.float32, -k, k)
        b_hh = jax.random.uniform(k4, (1, 4 * hidden_size), jnp.float32, -k, k)
        params["b"].append(b_ih + b_hh)
    key, k5, k6 = jax.random.split(key, 3)
    kl = 1.0 / jnp.sqrt(jnp.float32(hidden_size))
    params["w_lin"] = jax.random.uniform(
        k5, (hidden_size, future_steps), jnp.float32, -kl, kl)
    params["b_lin"] = jax.random.uniform(
        k6, (1, future_steps), jnp.float32, -kl, kl)
    return params


def reference_forward(x, hidden, cell, params, bf16_matmul=False):
    """Pure-JAX reference of the same forward (PyTorch gate order).  With
    bf16_matmul=True it applies the same bf16 operand casts as the kernel so the
    comparison is precision-matched."""
    mm_dtype = jnp.bfloat16 if bf16_matmul else jnp.float32
    L = hidden.shape[0]
    H = hidden.shape[-1]
    T = x.shape[1]
    seq = [x[:, t, :] for t in range(T)]
    for l in range(L):
        h, c = hidden[l], cell[l]
        w_ih = params["w_ih"][l].astype(mm_dtype)
        w_hh = params["w_hh"][l].astype(mm_dtype)
        out_seq = []
        for t in range(T):
            gates = (
                jnp.dot(seq[t].astype(mm_dtype), w_ih,
                        preferred_element_type=jnp.float32)
                + jnp.dot(h.astype(mm_dtype), w_hh,
                          preferred_element_type=jnp.float32)
                + params["b"][l]
            )
            i_g = jax.nn.sigmoid(gates[:, 0 * H:1 * H])
            f_g = jax.nn.sigmoid(gates[:, 1 * H:2 * H])
            g_g = jnp.tanh(gates[:, 2 * H:3 * H])
            o_g = jax.nn.sigmoid(gates[:, 3 * H:4 * H])
            c = f_g * c + i_g * g_g
            h = o_g * jnp.tanh(c)
            out_seq.append(h)
        seq = out_seq
    logits = seq[-1] @ params["w_lin"] + params["b_lin"]
    return jnp.maximum(logits, 0.0)


if __name__ == "__main__":
    # Small config consistent with the module's forward:
    #   args.model.input_size=16, hidden_size=32, num_layers=2, dropout=0.0
    #   args.data.future_steps=8
    B, T, I, H, L, F = 8, 8, 16, 32, 2, 8

    key = jax.random.PRNGKey(0)
    key, kx, kh, kc, kp = jax.random.split(key, 5)
    x = jax.random.normal(kx, (B, T, I), jnp.float32)
    hidden = jax.random.normal(kh, (L, B, H), jnp.float32)
    cell = jax.random.normal(kc, (L, B, H), jnp.float32)
    params = init_params(kp, I, H, L, F)

    out = multivariable_lstm_forward(x, hidden, cell, params)
    out = jax.block_until_ready(out)
    assert out.shape == (B, F)

    # Tight check against a precision-matched reference (same bf16 matmul casts).
    ref_matched = reference_forward(x, hidden, cell, params, bf16_matmul=BF16_MATMUL)
    assert jnp.allclose(out, ref_matched, atol=2e-3, rtol=2e-3), \
        "Pallas kernel mismatch vs precision-matched reference"

    # Loose sanity check against the pure-f32 PyTorch-semantics reference (catches gate
    # order / reordering / structural bugs; loose because of bf16 matmul rounding).
    ref_f32 = reference_forward(x, hidden, cell, params, bf16_matmul=False)
    assert jnp.allclose(out, ref_f32, atol=1e-1), \
        "Pallas kernel diverges grossly from f32 reference"

    print("KERNEL_OK")
</pallas_src>

<mosaic_0001>
module attributes {stable_mosaic.version = 11 : i64} {
  func.func @kernel(%arg0: memref<64x16xbf16, #tpu.memory_space<vmem>>, %arg1: memref<2x8x32xf32, #tpu.memory_space<vmem>>, %arg2: memref<2x8x32xf32, #tpu.memory_space<vmem>>, %arg3: memref<16x128xbf16, #tpu.memory_space<vmem>>, %arg4: memref<32x128xbf16, #tpu.memory_space<vmem>>, %arg5: memref<1x128xf32, #tpu.memory_space<vmem>>, %arg6: memref<32x128xbf16, #tpu.memory_space<vmem>>, %arg7: memref<32x128xbf16, #tpu.memory_space<vmem>>, %arg8: memref<1x128xf32, #tpu.memory_space<vmem>>, %arg9: memref<32x8xf32, #tpu.memory_space<vmem>>, %arg10: memref<1x8xf32, #tpu.memory_space<vmem>>, %arg11: memref<8x8xf32, #tpu.memory_space<vmem>>, %arg12: memref<64x32xbf16, #tpu.memory_space<vmem>>) attributes {dimension_semantics = [], scalar_prefetch = 0 : i64, scratch_operands = 1 : i64, tpu.core_type = #tpu.core_type<tc>} {
    %0 = tpu.iota {dimensions = array<i32: 1>} : vector<8x128xi32>
    %c64_i32 = arith.constant 64 : i32
    %1 = vector.broadcast %c64_i32 : i32 to vector<8x128xi32>
    %2 = arith.cmpi sge, %0, %1 : vector<8x128xi32>
    %c96_i32 = arith.constant 96 : i32
    %3 = vector.broadcast %c96_i32 : i32 to vector<8x128xi32>
    %4 = arith.cmpi slt, %0, %3 : vector<8x128xi32>
    %5 = arith.andi %2, %4 : vector<8x128xi1>
    %cst = arith.constant 1.000000e+00 : f32
    %cst_0 = arith.constant 5.000000e-01 : f32
    %6 = vector.broadcast %cst : f32 to vector<8x128xf32>
    %7 = vector.broadcast %cst_0 : f32 to vector<8x128xf32>
    %8 = arith.select %5, %6, %7 : vector<8x128xi1>, vector<8x128xf32>
    %cst_1 = arith.constant 0.000000e+00 : f32
    %cst_2 = arith.constant 5.000000e-01 : f32
    %9 = vector.broadcast %cst_1 : f32 to vector<8x128xf32>
    %10 = vector.broadcast %cst_2 : f32 to vector<8x128xf32>
    %11 = arith.select %5, %9, %10 : vector<8x128xi1>, vector<8x128xf32>
    %c0 = arith.constant 0 : index
    %c0_3 = arith.constant 0 : index
    %12 = vector.load %arg3[%c0, %c0_3] : memref<16x128xbf16, #tpu.memory_space<vmem>>, vector<16x128xbf16>
    %c0_4 = arith.constant 0 : index
    %c0_5 = arith.constant 0 : index
    %13 = vector.load %arg4[%c0_4, %c0_5] : memref<32x128xbf16, #tpu.memory_space<vmem>>, vector<32x128xbf16>
    %c0_6 = arith.constant 0 : index
    %c0_7 = arith.constant 0 : index
    %14 = vector.load %arg5[%c0_6, %c0_7] : memref<1x128xf32, #tpu.memory_space<vmem>>, vector<1x128xf32>
    %c0_8 = arith.constant 0 : index
    %c0_9 = arith.constant 0 : index
    %15 = vector.load %arg0[%c0_8, %c0_9] : memref<64x16xbf16, #tpu.memory_space<vmem>>, vector<64x16xbf16>
    %cst_10 = arith.constant dense<0.000000e+00> : vector<64x128xf32>
    %16 = tpu.matmul %15, %12, %cst_10 {dimension_numbers = #tpu.dot_dimension_numbers<[1], [0], [0], [1], [0, 0, 1, 1], [], []>} : vector<64x16xbf16>, vector<16x128xbf16>, vector<64x128xf32> -> vector<64x128xf32>
    %17 = vector.broadcast %14 : vector<1x128xf32> to vector<64x128xf32>
    %18 = arith.addf %16, %17 : vector<64x128xf32>
    %c0_11 = arith.constant 0 : index
    %c0_12 = arith.constant 0 : index
    %c0_13 = arith.constant 0 : index
    %19 = vector.load %arg1[%c0_11, %c0_12, %c0_13] : memref<2x8x32xf32, #tpu.memory_space<vmem>>, vector<1x8x32xf32>
    %20 = vector.shape_cast %19 : vector<1x8x32xf32> to vector<8x32xf32>
    %c0_14 = arith.constant 0 : index
    %c0_15 = arith.constant 0 : index
    %c0_16 = arith.constant 0 : index
    %21 = vector.load %arg2[%c0_14, %c0_15, %c0_16] : memref<2x8x32xf32, #tpu.memory_space<vmem>>, vector<1x8x32xf32>
    %22 = vector.shape_cast %21 : vector<1x8x32xf32> to vector<8x32xf32>
    %23 = vector.extract_strided_slice %18 {offsets = [0, 0], sizes = [8, 128], strides = [1, 1]} : vector<64x128xf32> to vector<8x128xf32>
    %24 = arith.truncf %20 : vector<8x32xf32> to vector<8x32xbf16>
    %cst_17 = arith.constant dense<0.000000e+00> : vector<8x128xf32>
    %25 = tpu.matmul %24, %13, %cst_17 {dimension_numbers = #tpu.dot_dimension_numbers<[1], [0], [0], [1], [0, 0, 1, 1], [], []>} : vector<8x32xbf16>, vector<32x128xbf16>, vector<8x128xf32> -> vector<8x128xf32>
    %26 = arith.addf %23, %25 : vector<8x128xf32>
    %27 = arith.mulf %26, %8 : vector<8x128xf32>
    %28 = math.tanh %27 : vector<8x128xf32>
    %29 = arith.mulf %28, %8 : vector<8x128xf32>
    %30 = arith.addf %29, %11 : vector<8x128xf32>
    %31 = vector.extract_strided_slice %30 {offsets = [0, 0], sizes = [8, 32], strides = [1, 1]} : vector<8x128xf32> to vector<8x32xf32>
    %32 = vector.extract_strided_slice %30 {offsets = [0, 32], sizes = [8, 32], strides = [1, 1]} : vector<8x128xf32> to vector<8x32xf32>
    %33 = vector.extract_strided_slice %30 {offsets = [0, 64], sizes = [8, 32], strides = [1, 1]} : vector<8x128xf32> to vector<8x32xf32>
    %34 = vector.extract_strided_slice %30 {offsets = [0, 96], sizes = [8, 32], strides = [1, 1]} : vector<8x128xf32> to vector<8x32xf32>
    %35 = arith.mulf %31, %22 : vector<8x32xf32>
    %36 = arith.mulf %32, %33 : vector<8x32xf32>
    %37 = arith.addf %35, %36 : vector<8x32xf32>
    %38 = math.tanh %37 : vector<8x32xf32>
    %39 = arith.mulf %34, %38 : vector<8x32xf32>
    %40 = arith.truncf %39 : vector<8x32xf32> to vector<8x32xbf16>
    %c0_18 = arith.constant 0 : index
    %c0_19 = arith.constant 0 : index
    %41 = vector.load %arg12[%c0_18, %c0_19] : memref<64x32xbf16, #tpu.memory_space<vmem>>, vector<8x32xbf16>
    tpu.vector_store %arg12[%c0_18, %c0_19], %40 {strides = array<i32>} : memref<64x32xbf16, #tpu.memory_space<vmem>>, vector<8x32xbf16>,
    %42 = vector.extract_strided_slice %18 {offsets = [8, 0], sizes = [8, 128], strides = [1, 1]} : vector<64x128xf32> to vector<8x128xf32>
    %43 = arith.truncf %39 : vector<8x32xf32> to vector<8x32xbf16>
    %cst_20 = arith.constant dense<0.000000e+00> : vector<8x128xf32>
    %44 = tpu.matmul %43, %13, %cst_20 {dimension_numbers = #tpu.dot_dimension_numbers<[1], [0], [0], [1], [0, 0, 1, 1], [], []>} : vector<8x32xbf16>, vector<32x128xbf16>, vector<8x128xf32> -> vector<8x128xf32>
    %45 = arith.addf %42, %44 : vector<8x128xf32>
    %46 = arith.mulf %45, %8 : vector<8x128xf32>
    %47 = math.tanh %46 : vector<8x128xf32>
    %48 = arith.mulf %47, %8 : vector<8x128xf32>
    %49 = arith.addf %48, %11 : vector<8x128xf32>
    %50 = vector.extract_strided_slice %49 {offsets = [0, 0], sizes = [8, 32], strides = [1, 1]} : vector<8x128xf32> to vector<8x32xf32>
    %51 = vector.extract_strided_slice %49 {offsets = [0, 32], sizes = [8, 32], strides = [1, 1]} : vector<8x128xf32> to vector<8x32xf32>
    %52 = vector.extract_strided_slice %49 {offsets = [0, 64], sizes = [8, 32], strides = [1, 1]} : vector<8x128xf32> to vector<8x32xf32>
    %53 = vector.extract_strided_slice %49 {offsets = [0, 96], sizes = [8, 32], strides = [1, 1]} : vector<8x128xf32> to vector<8x32xf32>
    %54 = arith.mulf %50, %37 : vector<8x32xf32>
    %55 = arith.mulf %51, %52 : vector<8x32xf32>
    %56 = arith.addf %54, %55 : vector<8x32xf32>
    %57 = math.tanh %56 : vector<8x32xf32>
    %58 = arith.mulf %53, %57 : vector<8x32xf32>
    %59 = arith.truncf %58 : vector<8x32xf32> to vector<8x32xbf16>
    %c8 = arith.constant 8 : index
    %c0_21 = arith.constant 0 : index
    %60 = vector.load %arg12[%c8, %c0_21] : memref<64x32xbf16, #tpu.memory_space<vmem>>, vector<8x32xbf16>
    tpu.vector_store %arg12[%c8, %c0_21], %59 {strides = array<i32>} : memref<64x32xbf16, #tpu.memory_space<vmem>>, vector<8x32xbf16>,
    %61 = vector.extract_strided_slice %18 {offsets = [16, 0], sizes = [8, 128], strides = [1, 1]} : vector<64x128xf32> to vector<8x128xf32>
    %62 = arith.truncf %58 : vector<8x32xf32> to vector<8x32xbf16>
    %cst_22 = arith.constant dense<0.000000e+00> : vector<8x128xf32>
    %63 = tpu.matmul %62, %13, %cst_22 {dimension_numbers = #tpu.dot_dimension_numbers<[1], [0], [0], [1], [0, 0, 1, 1], [], []>} : vector<8x32xbf16>, vector<32x128xbf16>, vector<8x128xf32> -> vector<8x128xf32>
    %64 = arith.addf %61, %63 : vector<8x128xf32>
    %65 = arith.mulf %64, %8 : vector<8x128xf32>
    %66 = math.tanh %65 : vector<8x128xf32>
    %67 = arith.mulf %66, %8 : vector<8x128xf32>
    %68 = arith.addf %67, %11 : vector<8x128xf32>
    %69 = vector.extract_strided_slice %68 {offsets = [0, 0], sizes = [8, 32], strides = [1, 1]} : vector<8x128xf32> to vector<8x32xf32>
    %70 = vector.extract_strided_slice %68 {offsets = [0, 32], sizes = [8, 32], strides = [1, 1]} : vector<8x128xf32> to vector<8x32xf32>
    %71 = vector.extract_strided_slice %68 {offsets = [0, 64], sizes = [8, 32], strides = [1, 1]} : vector<8x128xf32> to vector<8x32xf32>
    %72 = vector.extract_strided_slice %68 {offsets = [0, 96], sizes = [8, 32], strides = [1, 1]} : vector<8x128xf32> to vector<8x32xf32>
    %73 = arith.mulf %69, %56 : vector<8x32xf32>
    %74 = arith.mulf %70, %71 : vector<8x32xf32>
    %75 = arith.addf %73, %74 : vector<8x32xf32>
    %76 = math.tanh %75 : vector<8x32xf32>
    %77 = arith.mulf %72, %76 : vector<8x32xf32>
    %78 = arith.truncf %77 : vector<8x32xf32> to vector<8x32xbf16>
    %c16 = arith.constant 16 : index
    %c0_23 = arith.constant 0 : index
    %79 = vector.load %arg12[%c16, %c0_23] : memref<64x32xbf16, #tpu.memory_space<vmem>>, vector<8x32xbf16>
    tpu.vector_store %arg12[%c16, %c0_23], %78 {strides = array<i32>} : memref<64x32xbf16, #tpu.memory_space<vmem>>, vector<8x32xbf16>,
    %80 = vector.extract_strided_slice %18 {offsets = [24, 0], sizes = [8, 128], strides = [1, 1]} : vector<64x128xf32> to vector<8x128xf32>
    %81 = arith.truncf %77 : vector<8x32xf32> to vector<8x32xbf16>
    %cst_24 = arith.constant dense<0.000000e+00> : vector<8x128xf32>
    %82 = tpu.matmul %81, %13, %cst_24 {dimension_numbers = #tpu.dot_dimension_numbers<[1], [0], [0], [1], [0, 0, 1, 1], [], []>} : vector<8x32xbf16>, vector<32x128xbf16>, vector<8x128xf32> -> vector<8x128xf32>
    %83 = arith.addf %80, %82 : vector<8x128xf32>
    %84 = arith.mulf %83, %8 : vector<8x128xf32>
    %85 = math.tanh %84 : vector<8x128xf32>
    %86 = arith.mulf %85, %8 : vector<8x128xf32>
    %87 = arith.addf %86, %11 : vector<8x128xf32>
    %88 = vector.extract_strided_slice %87 {offsets = [0, 0], sizes = [8, 32], strides = [1, 1]} : vector<8x128xf32> to vector<8x32xf32>
    %89 = vector.extract_strided_slice %87 {offsets = [0, 32], sizes = [8, 32], strides = [1, 1]} : vector<8x128xf32> to vector<8x32xf32>
    %90 = vector.extract_strided_slice %87 {offsets = [0, 64], sizes = [8, 32], strides = [1, 1]} : vector<8x128xf32> to vector<8x32xf32>
    %91 = vector.extract_strided_slice %87 {offsets = [0, 96], sizes = [8, 32], strides = [1, 1]} : vector<8x128xf32> to vector<8x32xf32>
    %92 = arith.mulf %88, %75 : vector<8x32xf32>
    %93 = arith.mulf %89, %90 : vector<8x32xf32>
    %94 = arith.addf %92, %93 : vector<8x32xf32>
    %95 = math.tanh %94 : vector<8x32xf32>
    %96 = arith.mulf %91, %95 : vector<8x32xf32>
    %97 = arith.truncf %96 : vector<8x32xf32> to vector<8x32xbf16>
    %c24 = arith.constant 24 : index
    %c0_25 = arith.constant 0 : index
    %98 = vector.load %arg12[%c24, %c0_25] : memref<64x32xbf16, #tpu.memory_space<vmem>>, vector<8x32xbf16>
    tpu.vector_store %arg12[%c24, %c0_25], %97 {strides = array<i32>} : memref<64x32xbf16, #tpu.memory_space<vmem>>, vector<8x32xbf16>,
    %99 = vector.extract_strided_slice %18 {offsets = [32, 0], sizes = [8, 128], strides = [1, 1]} : vector<64x128xf32> to vector<8x128xf32>
    %100 = arith.truncf %96 : vector<8x32xf32> to vector<8x32xbf16>
    %cst_26 = arith.constant dense<0.000000e+00> : vector<8x128xf32>
    %101 = tpu.matmul %100, %13, %cst_26 {dimension_numbers = #tpu.dot_dimension_numbers<[1], [0], [0], [1], [0, 0, 1, 1], [], []>} : vector<8x32xbf16>, vector<32x128xbf16>, vector<8x128xf32> -> vector<8x128xf32>
    %102 = arith.addf %99, %101 : vector<8x128xf32>
    %103 = arith.mulf %102, %8 : vector<8x128xf32>
    %104 = math.tanh %103 : vector<8x128xf32>
    %105 = arith.mulf %104, %8 : vector<8x128xf32>
    %106 = arith.addf %105, %11 : vector<8x128xf32>
    %107 = vector.extract_strided_slice %106 {offsets = [0, 0], sizes = [8, 32], strides = [1, 1]} : vector<8x128xf32> to vector<8x32xf32>
    %108 = vector.extract_strided_slice %106 {offsets = [0, 32], sizes = [8, 32], strides = [1, 1]} : vector<8x128xf32> to vector<8x32xf32>
    %109 = vector.extract_strided_slice %106 {offsets = [0, 64], sizes = [8, 32], strides = [1, 1]} : vector<8x128xf32> to vector<8x32xf32>
    %110 = vector.extract_strided_slice %106 {offsets = [0, 96], sizes = [8, 32], strides = [1, 1]} : vector<8x128xf32> to vector<8x32xf32>
    %111 = arith.mulf %107, %94 : vector<8x32xf32>
    %112 = arith.mulf %108, %109 : vector<8x32xf32>
    %113 = arith.addf %111, %112 : vector<8x32xf32>
    %114 = math.tanh %113 : vector<8x32xf32>
    %115 = arith.mulf %110, %114 : vector<8x32xf32>
    %116 = arith.truncf %115 : vector<8x32xf32> to vector<8x32xbf16>
    %c32 = arith.constant 32 : index
    %c0_27 = arith.constant 0 : index
    %117 = vector.load %arg12[%c32, %c0_27] : memref<64x32xbf16, #tpu.memory_space<vmem>>, vector<8x32xbf16>
    tpu.vector_store %arg12[%c32, %c0_27], %116 {strides = array<i32>} : memref<64x32xbf16, #tpu.memory_space<vmem>>, vector<8x32xbf16>,
    %118 = vector.extract_strided_slice %18 {offsets = [40, 0], sizes = [8, 128], strides = [1, 1]} : vector<64x128xf32> to vector<8x128xf32>
    %119 = arith.truncf %115 : vector<8x32xf32> to vector<8x32xbf16>
    %cst_28 = arith.constant dense<0.000000e+00> : vector<8x128xf32>
    %120 = tpu.matmul %119, %13, %cst_28 {dimension_numbers = #tpu.dot_dimension_numbers<[1], [0], [0], [1], [0, 0, 1, 1], [], []>} : vector<8x32xbf16>, vector<32x128xbf16>, vector<8x128xf32> -> vector<8x128xf32>
    %121 = arith.addf %118, %120 : vector<8x128xf32>
    %122 = arith.mulf %121, %8 : vector<8x128xf32>
    %123 = math.tanh %122 : vector<8x128xf32>
    %124 = arith.mulf %123, %8 : vector<8x128xf32>
    %125 = arith.addf %124, %11 : vector<8x128xf32>
    %126 = vector.extract_strided_slice %125 {offsets = [0, 0], sizes = [8, 32], strides = [1, 1]} : vector<8x128xf32> to vector<8x32xf32>
    %127 = vector.extract_strided_slice %125 {offsets = [0, 32], sizes = [8, 32], strides = [1, 1]} : vector<8x128xf32> to vector<8x32xf32>
    %128 = vector.extract_strided_slice %125 {offsets = [0, 64], sizes = [8, 32], strides = [1, 1]} : vector<8x128xf32> to vector<8x32xf32>
    %129 = vector.extract_strided_slice %125 {offsets = [0, 96], sizes = [8, 32], strides = [1, 1]} : vector<8x128xf32> to vector<8x32xf32>
    %130 = arith.mulf %126, %113 : vector<8x32xf32>
    %131 = arith.mulf %127, %128 : vector<8x32xf32>
    %132 = arith.addf %130, %131 : vector<8x32xf32>
    %133 = math.tanh %132 : vector<8x32xf32>
    %134 = arith.mulf %129, %133 : vector<8x32xf32>
    %135 = arith.truncf %134 : vector<8x32xf32> to vector<8x32xbf16>
    %c40 = arith.constant 40 : index
    %c0_29 = arith.constant 0 : index
    %136 = vector.load %arg12[%c40, %c0_29] : memref<64x32xbf16, #tpu.memory_space<vmem>>, vector<8x32xbf16>
    tpu.vector_store %arg12[%c40, %c0_29], %135 {strides = array<i32>} : memref<64x32xbf16, #tpu.memory_space<vmem>>, vector<8x32xbf16>,
    %137 = vector.extract_strided_slice %18 {offsets = [48, 0], sizes = [8, 128], strides = [1, 1]} : vector<64x128xf32> to vector<8x128xf32>
    %138 = arith.truncf %134 : vector<8x32xf32> to vector<8x32xbf16>
    %cst_30 = arith.constant dense<0.000000e+00> : vector<8x128xf32>
    %139 = tpu.matmul %138, %13, %cst_30 {dimension_numbers = #tpu.dot_dimension_numbers<[1], [0], [0], [1], [0, 0, 1, 1], [], []>} : vector<8x32xbf16>, vector<32x128xbf16>, vector<8x128xf32> -> vector<8x128xf32>
    %140 = arith.addf %137, %139 : vector<8x128xf32>
    %141 = arith.mulf %140, %8 : vector<8x128xf32>
    %142 = math.tanh %141 : vector<8x128xf32>
    %143 = arith.mulf %142, %8 : vector<8x128xf32>
    %144 = arith.addf %143, %11 : vector<8x128xf32>
    %145 = vector.extract_strided_slice %144 {offsets = [0, 0], sizes = [8, 32], strides = [1, 1]} : vector<8x128xf32> to vector<8x32xf32>
    %146 = vector.extract_strided_slice %144 {offsets = [0, 32], sizes = [8, 32], strides = [1, 1]} : vector<8x128xf32> to vector<8x32xf32>
    %147 = vector.extract_strided_slice %144 {offsets = [0, 64], sizes = [8, 32], strides = [1, 1]} : vector<8x128xf32> to vector<8x32xf32>
    %148 = vector.extract_strided_slice %144 {offsets = [0, 96], sizes = [8, 32], strides = [1, 1]} : vector<8x128xf32> to vector<8x32xf32>
    %149 = arith.mulf %145, %132 : vector<8x32xf32>
    %150 = arith.mulf %146, %147 : vector<8x32xf32>
    %151 = arith.addf %149, %150 : vector<8x32xf32>
    %152 = math.tanh %151 : vector<8x32xf32>
    %153 = arith.mulf %148, %152 : vector<8x32xf32>
    %154 = arith.truncf %153 : vector<8x32xf32> to vector<8x32xbf16>
    %c48 = arith.constant 48 : index
    %c0_31 = arith.constant 0 : index
    %155 = vector.load %arg12[%c48, %c0_31] : memref<64x32xbf16, #tpu.memory_space<vmem>>, vector<8x32xbf16>
    tpu.vector_store %arg12[%c48, %c0_31], %154 {strides = array<i32>} : memref<64x32xbf16, #tpu.memory_space<vmem>>, vector<8x32xbf16>,
    %156 = vector.extract_strided_slice %18 {offsets = [56, 0], sizes = [8, 128], strides = [1, 1]} : vector<64x128xf32> to vector<8x128xf32>
    %157 = arith.truncf %153 : vector<8x32xf32> to vector<8x32xbf16>
    %cst_32 = arith.constant dense<0.000000e+00> : vector<8x128xf32>
    %158 = tpu.matmul %157, %13, %cst_32 {dimension_numbers = #tpu.dot_dimension_numbers<[1], [0], [0], [1], [0, 0, 1, 1], [], []>} : vector<8x32xbf16>, vector<32x128xbf16>, vector<8x128xf32> -> vector<8x128xf32>
    %159 = arith.addf %156, %158 : vector<8x128xf32>
    %160 = arith.mulf %159, %8 : vector<8x128xf32>
    %161 = math.tanh %160 : vector<8x128xf32>
    %162 = arith.mulf %161, %8 : vector<8x128xf32>
    %163 = arith.addf %162, %11 : vector<8x128xf32>
    %164 = vector.extract_strided_slice %163 {offsets = [0, 0], sizes = [8, 32], strides = [1, 1]} : vector<8x128xf32> to vector<8x32xf32>
    %165 = vector.extract_strided_slice %163 {offsets = [0, 32], sizes = [8, 32], strides = [1, 1]} : vector<8x128xf32> to vector<8x32xf32>
    %166 = vector.extract_strided_slice %163 {offsets = [0, 64], sizes = [8, 32], strides = [1, 1]} : vector<8x128xf32> to vector<8x32xf32>
    %167 = vector.extract_strided_slice %163 {offsets = [0, 96], sizes = [8, 32], strides = [1, 1]} : vector<8x128xf32> to vector<8x32xf32>
    %168 = arith.mulf %164, %151 : vector<8x32xf32>
    %169 = arith.mulf %165, %166 : vector<8x32xf32>
    %170 = arith.addf %168, %169 : vector<8x32xf32>
    %171 = math.tanh %170 : vector<8x32xf32>
    %172 = arith.mulf %167, %171 : vector<8x32xf32>
    %173 = arith.truncf %172 : vector<8x32xf32> to vector<8x32xbf16>
    %c56 = arith.constant 56 : index
    %c0_33 = arith.constant 0 : index
    %174 = vector.load %arg12[%c56, %c0_33] : memref<64x32xbf16, #tpu.memory_space<vmem>>, vector<8x32xbf16>
    tpu.vector_store %arg12[%c56, %c0_33], %173 {strides = array<i32>} : memref<64x32xbf16, #tpu.memory_space<vmem>>, vector<8x32xbf16>,
    %c0_34 = arith.constant 0 : index
    %c0_35 = arith.constant 0 : index
    %175 = vector.load %arg6[%c0_34, %c0_35] : memref<32x128xbf16, #tpu.memory_space<vmem>>, vector<32x128xbf16>
    %c0_36 = arith.constant 0 : index
    %c0_37 = arith.constant 0 : index
    %176 = vector.load %arg7[%c0_36, %c0_37] : memref<32x128xbf16, #tpu.memory_space<vmem>>, vector<32x128xbf16>
    %c0_38 = arith.constant 0 : index
    %c0_39 = arith.constant 0 : index
    %177 = vector.load %arg8[%c0_38, %c0_39] : memref<1x128xf32, #tpu.memory_space<vmem>>, vector<1x128xf32>
    %c0_40 = arith.constant 0 : index
    %c0_41 = arith.constant 0 : index
    %178 = vector.load %arg12[%c0_40, %c0_41] : memref<64x32xbf16, #tpu.memory_space<vmem>>, vector<64x32xbf16>
    %cst_42 = arith.constant dense<0.000000e+00> : vector<64x128xf32>
    %179 = tpu.matmul %178, %175, %cst_42 {dimension_numbers = #tpu.dot_dimension_numbers<[1], [0], [0], [1], [0, 0, 1, 1], [], []>} : vector<64x32xbf16>, vector<32x128xbf16>, vector<64x128xf32> -> vector<64x128xf32>
    %180 = vector.broadcast %177 : vector<1x128xf32> to vector<64x128xf32>
    %181 = arith.addf %179, %180 : vector<64x128xf32>
    %c1 = arith.constant 1 : index
    %c0_43 = arith.constant 0 : index
    %c0_44 = arith.constant 0 : index
    %182 = vector.load %arg1[%c1, %c0_43, %c0_44] : memref<2x8x32xf32, #tpu.memory_space<vmem>>, vector<1x8x32xf32>
    %183 = vector.shape_cast %182 : vector<1x8x32xf32> to vector<8x32xf32>
    %c1_45 = arith.constant 1 : index
    %c0_46 = arith.constant 0 : index
    %c0_47 = arith.constant 0 : index
    %184 = vector.load %arg2[%c1_45, %c0_46, %c0_47] : memref<2x8x32xf32, #tpu.memory_space<vmem>>, vector<1x8x32xf32>
    %185 = vector.shape_cast %184 : vector<1x8x32xf32> to vector<8x32xf32>
    %186 = vector.extract_strided_slice %181 {offsets = [0, 0], sizes = [8, 128], strides = [1, 1]} : vector<64x128xf32> to vector<8x128xf32>
    %187 = arith.truncf %183 : vector<8x32xf32> to vector<8x32xbf16>
    %cst_48 = arith.constant dense<0.000000e+00> : vector<8x128xf32>
    %188 = tpu.matmul %187, %176, %cst_48 {dimension_numbers = #tpu.dot_dimension_numbers<[1], [0], [0], [1], [0, 0, 1, 1], [], []>} : vector<8x32xbf16>, vector<32x128xbf16>, vector<8x128xf32> -> vector<8x128xf32>
    %189 = arith.addf %186, %188 : vector<8x128xf32>
    %190 = arith.mulf %189, %8 : vector<8x128xf32>
    %191 = math.tanh %190 : vector<8x128xf32>
    %192 = arith.mulf %191, %8 : vector<8x128xf32>
    %193 = arith.addf %192, %11 : vector<8x128xf32>
    %194 = vector.extract_strided_slice %193 {offsets = [0, 0], sizes = [8, 32], strides = [1, 1]} : vector<8x128xf32> to vector<8x32xf32>
    %195 = vector.extract_strided_slice %193 {offsets = [0, 32], sizes = [8, 32], strides = [1, 1]} : vector<8x128xf32> to vector<8x32xf32>
    %196 = vector.extract_strided_slice %193 {offsets = [0, 64], sizes = [8, 32], strides = [1, 1]} : vector<8x128xf32> to vector<8x32xf32>
    %197 = vector.extract_strided_slice %193 {offsets = [0, 96], sizes = [8, 32], strides = [1, 1]} : vector<8x128xf32> to vector<8x32xf32>
    %198 = arith.mulf %194, %185 : vector<8x32xf32>
    %199 = arith.mulf %195, %196 : vector<8x32xf32>
    %200 = arith.addf %198, %199 : vector<8x32xf32>
    %201 = math.tanh %200 : vector<8x32xf32>
    %202 = arith.mulf %197, %201 : vector<8x32xf32>
    %203 = vector.extract_strided_slice %181 {offsets = [8, 0], sizes = [8, 128], strides = [1, 1]} : vector<64x128xf32> to vector<8x128xf32>
    %204 = arith.truncf %202 : vector<8x32xf32> to vector<8x32xbf16>
    %cst_49 = arith.constant dense<0.000000e+00> : vector<8x128xf32>
    %205 = tpu.matmul %204, %176, %cst_49 {dimension_numbers = #tpu.dot_dimension_numbers<[1], [0], [0], [1], [0, 0, 1, 1], [], []>} : vector<8x32xbf16>, vector<32x128xbf16>, vector<8x128xf32> -> vector<8x128xf32>
    %206 = arith.addf %203, %205 : vector<8x128xf32>
    %207 = arith.mulf %206, %8 : vector<8x128xf32>
    %208 = math.tanh %207 : vector<8x128xf32>
    %209 = arith.mulf %208, %8 : vector<8x128xf32>
    %210 = arith.addf %209, %11 : vector<8x128xf32>
    %211 = vector.extract_strided_slice %210 {offsets = [0, 0], sizes = [8, 32], strides = [1, 1]} : vector<8x128xf32> to vector<8x32xf32>
    %212 = vector.extract_strided_slice %210 {offsets = [0, 32], sizes = [8, 32], strides = [1, 1]} : vector<8x128xf32> to vector<8x32xf32>
    %213 = vector.extract_strided_slice %210 {offsets = [0, 64], sizes = [8, 32], strides = [1, 1]} : vector<8x128xf32> to vector<8x32xf32>
    %214 = vector.extract_strided_slice %210 {offsets = [0, 96], sizes = [8, 32], strides = [1, 1]} : vector<8x128xf32> to vector<8x32xf32>
    %215 = arith.mulf %211, %200 : vector<8x32xf32>
    %216 = arith.mulf %212, %213 : vector<8x32xf32>
    %217 = arith.addf %215, %216 : vector<8x32xf32>
    %218 = math.tanh %217 : vector<8x32xf32>
    %219 = arith.mulf %214, %218 : vector<8x32xf32>
    %220 = vector.extract_strided_slice %181 {offsets = [16, 0], sizes = [8, 128], strides = [1, 1]} : vector<64x128xf32> to vector<8x128xf32>
    %221 = arith.truncf %219 : vector<8x32xf32> to vector<8x32xbf16>
    %cst_50 = arith.constant dense<0.000000e+00> : vector<8x128xf32>
    %222 = tpu.matmul %221, %176, %cst_50 {dimension_numbers = #tpu.dot_dimension_numbers<[1], [0], [0], [1], [0, 0, 1, 1], [], []>} : vector<8x32xbf16>, vector<32x128xbf16>, vector<8x128xf32> -> vector<8x128xf32>
    %223 = arith.addf %220, %222 : vector<8x128xf32>
    %224 = arith.mulf %223, %8 : vector<8x128xf32>
    %225 = math.tanh %224 : vector<8x128xf32>
    %226 = arith.mulf %225, %8 : vector<8x128xf32>
    %227 = arith.addf %226, %11 : vector<8x128xf32>
    %228 = vector.extract_strided_slice %227 {offsets = [0, 0], sizes = [8, 32], strides = [1, 1]} : vector<8x128xf32> to vector<8x32xf32>
    %229 = vector.extract_strided_slice %227 {offsets = [0, 32], sizes = [8, 32], strides = [1, 1]} : vector<8x128xf32> to vector<8x32xf32>
    %230 = vector.extract_strided_slice %227 {offsets = [0, 64], sizes = [8, 32], strides = [1, 1]} : vector<8x128xf32> to vector<8x32xf32>
    %231 = vector.extract_strided_slice %227 {offsets = [0, 96], sizes = [8, 32], strides = [1, 1]} : vector<8x128xf32> to vector<8x32xf32>
    %232 = arith.mulf %228, %217 : vector<8x32xf32>
    %233 = arith.mulf %229, %230 : vector<8x32xf32>
    %234 = arith.addf %232, %233 : vector<8x32xf32>
    %235 = math.tanh %234 : vector<8x32xf32>
    %236 = arith.mulf %231, %235 : vector<8x32xf32>
    %237 = vector.extract_strided_slice %181 {offsets = [24, 0], sizes = [8, 128], strides = [1, 1]} : vector<64x128xf32> to vector<8x128xf32>
    %238 = arith.truncf %236 : vector<8x32xf32> to vector<8x32xbf16>
    %cst_51 = arith.constant dense<0.000000e+00> : vector<8x128xf32>
    %239 = tpu.matmul %238, %176, %cst_51 {dimension_numbers = #tpu.dot_dimension_numbers<[1], [0], [0], [1], [0, 0, 1, 1], [], []>} : vector<8x32xbf16>, vector<32x128xbf16>, vector<8x128xf32> -> vector<8x128xf32>
    %240 = arith.addf %237, %239 : vector<8x128xf32>
    %241 = arith.mulf %240, %8 : vector<8x128xf32>
    %242 = math.tanh %241 : vector<8x128xf32>
    %243 = arith.mulf %242, %8 : vector<8x128xf32>
    %244 = arith.addf %243, %11 : vector<8x128xf32>
    %245 = vector.extract_strided_slice %244 {offsets = [0, 0], sizes = [8, 32], strides = [1, 1]} : vector<8x128xf32> to vector<8x32xf32>
    %246 = vector.extract_strided_slice %244 {offsets = [0, 32], sizes = [8, 32], strides = [1, 1]} : vector<8x128xf32> to vector<8x32xf32>
    %247 = vector.extract_strided_slice %244 {offsets = [0, 64], sizes = [8, 32], strides = [1, 1]} : vector<8x128xf32> to vector<8x32xf32>
    %248 = vector.extract_strided_slice %244 {offsets = [0, 96], sizes = [8, 32], strides = [1, 1]} : vector<8x128xf32> to vector<8x32xf32>
    %249 = arith.mulf %245, %234 : vector<8x32xf32>
    %250 = arith.mulf %246, %247 : vector<8x32xf32>
    %251 = arith.addf %249, %250 : vector<8x32xf32>
    %252 = math.tanh %251 : vector<8x32xf32>
    %253 = arith.mulf %248, %252 : vector<8x32xf32>
    %254 = vector.extract_strided_slice %181 {offsets = [32, 0], sizes = [8, 128], strides = [1, 1]} : vector<64x128xf32> to vector<8x128xf32>
    %255 = arith.truncf %253 : vector<8x32xf32> to vector<8x32xbf16>
    %cst_52 = arith.constant dense<0.000000e+00> : vector<8x128xf32>
    %256 = tpu.matmul %255, %176, %cst_52 {dimension_numbers = #tpu.dot_dimension_numbers<[1], [0], [0], [1], [0, 0, 1, 1], [], []>} : vector<8x32xbf16>, vector<32x128xbf16>, vector<8x128xf32> -> vector<8x128xf32>
    %257 = arith.addf %254, %256 : vector<8x128xf32>
    %258 = arith.mulf %257, %8 : vector<8x128xf32>
    %259 = math.tanh %258 : vector<8x128xf32>
    %260 = arith.mulf %259, %8 : vector<8x128xf32>
    %261 = arith.addf %260, %11 : vector<8x128xf32>
    %262 = vector.extract_strided_slice %261 {offsets = [0, 0], sizes = [8, 32], strides = [1, 1]} : vector<8x128xf32> to vector<8x32xf32>
    %263 = vector.extract_strided_slice %261 {offsets = [0, 32], sizes = [8, 32], strides = [1, 1]} : vector<8x128xf32> to vector<8x32xf32>
    %264 = vector.extract_strided_slice %261 {offsets = [0, 64], sizes = [8, 32], strides = [1, 1]} : vector<8x128xf32> to vector<8x32xf32>
    %265 = vector.extract_strided_slice %261 {offsets = [0, 96], sizes = [8, 32], strides = [1, 1]} : vector<8x128xf32> to vector<8x32xf32>
    %266 = arith.mulf %262, %251 : vector<8x32xf32>
    %267 = arith.mulf %263, %264 : vector<8x32xf32>
    %268 = arith.addf %266, %267 : vector<8x32xf32>
    %269 = math.tanh %268 : vector<8x32xf32>
    %270 = arith.mulf %265, %269 : vector<8x32xf32>
    %271 = vector.extract_strided_slice %181 {offsets = [40, 0], sizes = [8, 128], strides = [1, 1]} : vector<64x128xf32> to vector<8x128xf32>
    %272 = arith.truncf %270 : vector<8x32xf32> to vector<8x32xbf16>
    %cst_53 = arith.constant dense<0.000000e+00> : vector<8x128xf32>
    %273 = tpu.matmul %272, %176, %cst_53 {dimension_numbers = #tpu.dot_dimension_numbers<[1], [0], [0], [1], [0, 0, 1, 1], [], []>} : vector<8x32xbf16>, vector<32x128xbf16>, vector<8x128xf32> -> vector<8x128xf32>
    %274 = arith.addf %271, %273 : vector<8x128xf32>
    %275 = arith.mulf %274, %8 : vector<8x128xf32>
    %276 = math.tanh %275 : vector<8x128xf32>
    %277 = arith.mulf %276, %8 : vector<8x128xf32>
    %278 = arith.addf %277, %11 : vector<8x128xf32>
    %279 = vector.extract_strided_slice %278 {offsets = [0, 0], sizes = [8, 32], strides = [1, 1]} : vector<8x128xf32> to vector<8x32xf32>
    %280 = vector.extract_strided_slice %278 {offsets = [0, 32], sizes = [8, 32], strides = [1, 1]} : vector<8x128xf32> to vector<8x32xf32>
    %281 = vector.extract_strided_slice %278 {offsets = [0, 64], sizes = [8, 32], strides = [1, 1]} : vector<8x128xf32> to vector<8x32xf32>
    %282 = vector.extract_strided_slice %278 {offsets = [0, 96], sizes = [8, 32], strides = [1, 1]} : vector<8x128xf32> to vector<8x32xf32>
    %283 = arith.mulf %279, %268 : vector<8x32xf32>
    %284 = arith.mulf %280, %281 : vector<8x32xf32>
    %285 = arith.addf %283, %284 : vector<8x32xf32>
    %286 = math.tanh %285 : vector<8x32xf32>
    %287 = arith.mulf %282, %286 : vector<8x32xf32>
    %288 = vector.extract_strided_slice %181 {offsets = [48, 0], sizes = [8, 128], strides = [1, 1]} : vector<64x128xf32> to vector<8x128xf32>
    %289 = arith.truncf %287 : vector<8x32xf32> to vector<8x32xbf16>
    %cst_54 = arith.constant dense<0.000000e+00> : vector<8x128xf32>
    %290 = tpu.matmul %289, %176, %cst_54 {dimension_numbers = #tpu.dot_dimension_numbers<[1], [0], [0], [1], [0, 0, 1, 1], [], []>} : vector<8x32xbf16>, vector<32x128xbf16>, vector<8x128xf32> -> vector<8x128xf32>
    %291 = arith.addf %288, %290 : vector<8x128xf32>
    %292 = arith.mulf %291, %8 : vector<8x128xf32>
    %293 = math.tanh %292 : vector<8x128xf32>
    %294 = arith.mulf %293, %8 : vector<8x128xf32>
    %295 = arith.addf %294, %11 : vector<8x128xf32>
    %296 = vector.extract_strided_slice %295 {offsets = [0, 0], sizes = [8, 32], strides = [1, 1]} : vector<8x128xf32> to vector<8x32xf32>
    %297 = vector.extract_strided_slice %295 {offsets = [0, 32], sizes = [8, 32], strides = [1, 1]} : vector<8x128xf32> to vector<8x32xf32>
    %298 = vector.extract_strided_slice %295 {offsets = [0, 64], sizes = [8, 32], strides = [1, 1]} : vector<8x128xf32> to vector<8x32xf32>
    %299 = vector.extract_strided_slice %295 {offsets = [0, 96], sizes = [8, 32], strides = [1, 1]} : vector<8x128xf32> to vector<8x32xf32>
    %300 = arith.mulf %296, %285 : vector<8x32xf32>
    %301 = arith.mulf %297, %298 : vector<8x32xf32>
    %302 = arith.addf %300, %301 : vector<8x32xf32>
    %303 = math.tanh %302 : vector<8x32xf32>
    %304 = arith.mulf %299, %303 : vector<8x32xf32>
    %305 = vector.extract_strided_slice %181 {offsets = [56, 0], sizes = [8, 128], strides = [1, 1]} : vector<64x128xf32> to vector<8x128xf32>
    %306 = arith.truncf %304 : vector<8x32xf32> to vector<8x32xbf16>
    %cst_55 = arith.constant dense<0.000000e+00> : vector<8x128xf32>
    %307 = tpu.matmul %306, %176, %cst_55 {dimension_numbers = #tpu.dot_dimension_numbers<[1], [0], [0], [1], [0, 0, 1, 1], [], []>} : vector<8x32xbf16>, vector<32x128xbf16>, vector<8x128xf32> -> vector<8x128xf32>
    %308 = arith.addf %305, %307 : vector<8x128xf32>
    %309 = arith.mulf %308, %8 : vector<8x128xf32>
    %310 = math.tanh %309 : vector<8x128xf32>
    %311 = arith.mulf %310, %8 : vector<8x128xf32>
    %312 = arith.addf %311, %11 : vector<8x128xf32>
    %313 = vector.extract_strided_slice %312 {offsets = [0, 0], sizes = [8, 32], strides = [1, 1]} : vector<8x128xf32> to vector<8x32xf32>
    %314 = vector.extract_strided_slice %312 {offsets = [0, 32], sizes = [8, 32], strides = [1, 1]} : vector<8x128xf32> to vector<8x32xf32>
    %315 = vector.extract_strided_slice %312 {offsets = [0, 64], sizes = [8, 32], strides = [1, 1]} : vector<8x128xf32> to vector<8x32xf32>
    %316 = vector.extract_strided_slice %312 {offsets = [0, 96], sizes = [8, 32], strides = [1, 1]} : vector<8x128xf32> to vector<8x32xf32>
    %317 = arith.mulf %313, %302 : vector<8x32xf32>
    %318 = arith.mulf %314, %315 : vector<8x32xf32>
    %319 = arith.addf %317, %318 : vector<8x32xf32>
    %320 = math.tanh %319 : vector<8x32xf32>
    %321 = arith.mulf %316, %320 : vector<8x32xf32>
    %c0_56 = arith.constant 0 : index
    %c0_57 = arith.constant 0 : index
    %322 = vector.load %arg9[%c0_56, %c0_57] : memref<32x8xf32, #tpu.memory_space<vmem>>, vector<32x8xf32>
    %cst_58 = arith.constant dense<0.000000e+00> : vector<8x8xf32>
    %323 = tpu.matmul %321, %322, %cst_58 {dimension_numbers = #tpu.dot_dimension_numbers<[1], [0], [0], [1], [0, 0, 1, 1], [], []>} : vector<8x32xf32>, vector<32x8xf32>, vector<8x8xf32> -> vector<8x8xf32>
    %c0_59 = arith.constant 0 : index
    %c0_60 = arith.constant 0 : index
    %324 = vector.load %arg10[%c0_59, %c0_60] : memref<1x8xf32, #tpu.memory_space<vmem>>, vector<1x8xf32>
    %325 = vector.broadcast %324 : vector<1x8xf32> to vector<8x8xf32>
    %326 = arith.addf %323, %325 : vector<8x8xf32>
    %cst_61 = arith.constant 0.000000e+00 : f32
    %327 = vector.broadcast %cst_61 : f32 to vector<8x8xf32>
    %328 = arith.maximumf %326, %327 : vector<8x8xf32>
    %c0_62 = arith.constant 0 : index
    %c0_63 = arith.constant 0 : index
    %329 = vector.load %arg11[%c0_62, %c0_63] : memref<8x8xf32, #tpu.memory_space<vmem>>, vector<8x8xf32>
    tpu.vector_store %arg11[%c0_62, %c0_63], %328 {strides = array<i32>} : memref<8x8xf32, #tpu.memory_space<vmem>>, vector<8x8xf32>,
    return
  }
}

</mosaic_0001>

<llo_original>
// kernel: tpu_custom_call.1
$region0: #{tpu_custom_call.1}
  #allocation0 [shape = 'u32[]', space=smem, size = 0x4, offset = 0x4, fixed_abs, tag = 'smem constant byte address 0x4 - core index']
  #allocation1 [shape = 'u32[144,128]{1,0:T(1,128)}', space=vmem, size = 0x12000, scoped, tag = 'internal scratch']
  #allocation2 [shape = 'bf16[64,32]{1,0:T(16,128)(2,1)}', space=vmem, size = 0x4000, scoped, tag = 'scratch operand']
  %s0 = inlined_call_operand.vmem [shape: bf16[64,16], index: 0, kind: input, shape index: {}]
  %s1 = inlined_call_operand.vmem [shape: f32[2,8,32], index: 1, kind: input, shape index: {}]
  %s2 = inlined_call_operand.vmem [shape: f32[2,8,32], index: 2, kind: input, shape index: {}]
  %s3 = inlined_call_operand.hbm [shape: bf16[16,128], index: 3, kind: input, shape index: {}]
  %s4 = inlined_call_operand.vmem [shape: bf16[32,128], index: 4, kind: input, shape index: {}]
  %s5 = inlined_call_operand.vmem [shape: f32[1,128], index: 5, kind: input, shape index: {}]
  %s6 = inlined_call_operand.vmem [shape: bf16[32,128], index: 6, kind: input, shape index: {}]
  %s7 = inlined_call_operand.vmem [shape: bf16[32,128], index: 7, kind: input, shape index: {}]
  %s8 = inlined_call_operand.vmem [shape: f32[1,128], index: 8, kind: input, shape index: {}]
  %s9 = inlined_call_operand.vmem [shape: f32[32,8], index: 9, kind: input, shape index: {}]
  %s10 = inlined_call_operand.vmem [shape: f32[1,8], index: 10, kind: input, shape index: {}]
  %s11 = inlined_call_operand.hbm [shape: f32[8,8], index: 11, kind: output, shape index: {}]
  %s12 = sld [smem:[#allocation0]]
  $region58: #{tpu_custom_call.1} parent=0
    _
  %s14 = ssub.s32 1, %s12
  %s15 = scalar_select 0, %s14, %s12
  $region1: #{tpu_custom_call.1} parent=0
    #allocation3 [shape = 'u8[4096]{0}', space=vmem, size = 0x1000, scoped, tag = 'input window, operand 3, single buffered']
    #allocation4 [shape = 's32[1]{0}', space=sflag, size = 0x4, scoped, tag = 'scoped memory for tpu_custom_call.1']
    #allocation5 [shape = 's32[1]{0}', space=sflag, size = 0x4, scoped, tag = 'scoped memory for tpu_custom_call.1']
    #allocation6 [shape = 'u8[4096]{0}', space=vmem, size = 0x1000, scoped, tag = 'output window, operand 0, single buffered']
    %16 = vsyncpa [#allocation4], 0
    %17 = vsyncpa [#allocation5], 0
    // Predicated region
    $region2: #{tpu_custom_call.1} parent=1 // pred_check
      _
    $region3: #{tpu_custom_call.1} parent=1 // pred_check_branch
      %19 = sbr.rel (0) target = $region5
    $region4: #{tpu_custom_call.1} parent=1 // pred_region
      _
    $region5: #{tpu_custom_call.1} parent=1 // pred_fallthru
      _
    // Predicated region
    $region6: #{tpu_custom_call.1} parent=1 // pred_check
      _
    $region7: #{tpu_custom_call.1} parent=1 // pred_check_branch
      %21 = sbr.rel (0) target = $region9
    $region8: #{tpu_custom_call.1} parent=1 // pred_region
      _
    $region9: #{tpu_custom_call.1} parent=1 // pred_fallthru
      _
    // Predicated region
    $region10: #{tpu_custom_call.1} parent=1 // pred_check
      _
    $region11: #{tpu_custom_call.1} parent=1 // pred_check_branch
      %23 = sbr.rel (0) target = $region13
    $region12: #{tpu_custom_call.1} parent=1 // pred_region
      _
    $region13: #{tpu_custom_call.1} parent=1 // pred_fallthru
      _
    // Predicated region
    $region14: #{tpu_custom_call.1} parent=1 // pred_check
      _
    $region15: #{tpu_custom_call.1} parent=1 // pred_check_branch
      %25 = sbr.rel (0) target = $region17
    $region16: #{tpu_custom_call.1} parent=1 // pred_region
      %s27 = ssub.s32 128, 128
      %28 = vsyncadd [#allocation4], %s27
      %s29 = sshll.u32 [#allocation3], 4
      %s30 = int_to_ptr.vmem [resolvable:$true] %s29
      %35 = dma.hbm_to_vmem [thread:$0]  %s3, 128, %s30, [#allocation4], 64, 64, 4
    $region17: #{tpu_custom_call.1} parent=1 // pred_fallthru
      _
    // Predicated region
    $region18: #{tpu_custom_call.1} parent=1 // pred_check
      _
    $region19: #{tpu_custom_call.1} parent=1 // pred_check_branch
      %37 = sbr.rel (0) target = $region21
    $region20: #{tpu_custom_call.1} parent=1 // pred_region
      _
    $region21: #{tpu_custom_call.1} parent=1 // pred_fallthru
      _
    // Predicated region
    $region22: #{tpu_custom_call.1} parent=1 // pred_check
      _
    $region23: #{tpu_custom_call.1} parent=1 // pred_check_branch
      %39 = sbr.rel (0) target = $region25
    $region24: #{tpu_custom_call.1} parent=1 // pred_region
      _
    $region25: #{tpu_custom_call.1} parent=1 // pred_fallthru
      _
    // Predicated region
    $region26: #{tpu_custom_call.1} parent=1 // pred_check
      _
    $region27: #{tpu_custom_call.1} parent=1 // pred_check_branch
      %41 = sbr.rel (0) target = $region29
    $region28: #{tpu_custom_call.1} parent=1 // pred_region
      _
    $region29: #{tpu_custom_call.1} parent=1 // pred_fallthru
      _
    // Predicated region
    $region30: #{tpu_custom_call.1} parent=1 // pred_check
      _
    $region31: #{tpu_custom_call.1} parent=1 // pred_check_branch
      %43 = sbr.rel (0) target = $region33
    $region32: #{tpu_custom_call.1} parent=1 // pred_region
      _
    $region33: #{tpu_custom_call.1} parent=1 // pred_fallthru
      _
    // Predicated region
    $region34: #{tpu_custom_call.1} parent=1 // pred_check
      _
    $region35: #{tpu_custom_call.1} parent=1 // pred_check_branch
      %45 = sbr.rel (0) target = $region37
    $region36: #{tpu_custom_call.1} parent=1 // pred_region
      _
    $region37: #{tpu_custom_call.1} parent=1 // pred_fallthru
      _
    // Predicated region
    $region38: #{tpu_custom_call.1} parent=1 // pred_check
      _
    $region39: #{tpu_custom_call.1} parent=1 // pred_check_branch
      %47 = sbr.rel (0) target = $region41
    $region40: #{tpu_custom_call.1} parent=1 // pred_region
      _
    $region41: #{tpu_custom_call.1} parent=1 // pred_fallthru
      _
    // Predicated region
    $region42: #{tpu_custom_call.1} parent=1 // pred_check
      _
    $region43: #{tpu_custom_call.1} parent=1 // pred_check_branch
      %49 = sbr.rel (0) target = $region45
    $region44: #{tpu_custom_call.1} parent=1 // pred_region
      _
    $region45: #{tpu_custom_call.1} parent=1 // pred_fallthru
      _
    // Predicated region
    $region46: #{tpu_custom_call.1} parent=1 // pred_check
      _
    $region47: #{tpu_custom_call.1} parent=1 // pred_check_branch
      %51 = sbr.rel (0) target = $region49
    $region48: #{tpu_custom_call.1} parent=1 // pred_region
      %52 = dma.done [#allocation4], 128
    $region49: #{tpu_custom_call.1} parent=1 // pred_fallthru
      _
    %v54 = vlaneseq
    %v55 = vand.u32 %v54, 127
    %vm56 = vcmp.ge.s32.totalorder %v55, 64
    %vm57 = vcmp.lt.s32.totalorder %v55, 96
    %vm58 = vmand %vm56, %vm57
    %v59 = vsel %vm58, 1.0, 0.5
    %v60 = vsel %vm58, 0.0, 0.5
    %v61 = vld [vmem:[#allocation3] sm:$0xf]
    %v62 = vld [vmem:[#allocation3 + $0x4] sm:$0xf]
    %v63 = vld [vmem:[%s4] sm:$0xf]
    %v64 = vld [vmem:[%s4 + $0x4] sm:$0xf]
    %v65 = vld [vmem:[%s4 + $0x8] sm:$0xf]
    %v66 = vld [vmem:[%s4 + $0xc] sm:$0xf]
    %v67 = vld [vmem:[%s5] sm:$0x1]
    %v68 = vld [vmem:[%s0] sm:$0xf]
    %v69 = vld [vmem:[%s0 + $0x4] sm:$0xf]
    %v70 = vld [vmem:[%s0 + $0x8] sm:$0xf]
    %v71 = vld [vmem:[%s0 + $0xc] sm:$0xf]
    %v72 = vld [vmem:[%s0 + $0x10] sm:$0xf]
    %v73 = vld [vmem:[%s0 + $0x14] sm:$0xf]
    %v74 = vld [vmem:[%s0 + $0x18] sm:$0xf]
    %v75 = vld [vmem:[%s0 + $0x1c] sm:$0xf]
    %v77 = vlaneseq
    %v78 = vshrl.u32 %v77, 7
    %v79 = vsub.s32 0, %v78
    %v80 = vrot.slane %v67, %v79
    %v90 = vunpack.c.l.b16 %v68
    %v91 = vunpack.c.l.b16 %v69
    %v92 = vunpack.c.l.b16 %v70
    %v93 = vunpack.c.l.b16 %v71
    %v94 = vunpack.c.l.b16 %v72
    %v95 = vunpack.c.l.b16 %v73
    %v96 = vunpack.c.l.b16 %v74
    %v97 = vunpack.c.l.b16 %v75
    %v98 = vpack.c.b16 %v91, %v90
    %v99 = vpack.c.b16 %v93, %v92
    %v100 = vpack.c.b16 %v95, %v94
    %v101 = vpack.c.b16 %v97, %v96
    %v104 = vunpack.c.l.b16 %v61
    %v105 = vunpack.c.l.b16 %v62
    %v106 = vpack.c.b16 %v105, %v104
    %vm108 = vcmask 130048
    %v110 = vsel %vm108, %v98, 0
    %v113 = vsel %vm108, %v99, 0
    %v116 = vsel %vm108, %v100, 0
    %v119 = vsel %vm108, %v101, 0
    %121 = vmatprep.subr.bf16.mxu0 0
    %122 = vmatpush1.bf16.msra.mxu0 %v106
    %123 = vmatprep.subr.bf16.mxu0 0
    %124 = vmatpush1.bf16.msra.mxu0 0
    %125 = vmatprep.subr.bf16.mxu0 0
    %126 = vmatpush1.bf16.msra.mxu0 0
    %127 = vmatprep.subr.bf16.mxu0 0
    %128 = vmatpush1.bf16.msra.mxu0 0
    %129 = vmatprep.subr.bf16.mxu0 0
    %130 = vmatpush1.bf16.msra.mxu0 0
    %131 = vmatprep.subr.bf16.mxu0 0
    %132 = vmatpush1.bf16.msra.mxu0 0
    %133 = vmatprep.subr.bf16.mxu0 0
    %134 = vmatpush1.bf16.msra.mxu0 0
    %135 = vmatprep.subr.bf16.mxu0 0
    %136 = vmatpush1.bf16.msra.mxu0 0
    %137 = vmatprep.subr.bf16.mxu0 0
    %138 = vmatpush1.bf16.msra.mxu0 0
    %139 = vmatprep.subr.bf16.mxu0 0
    %140 = vmatpush1.bf16.msra.mxu0 0
    %141 = vmatprep.subr.bf16.mxu0 0
    %142 = vmatpush1.bf16.msra.mxu0 0
    %143 = vmatprep.subr.bf16.mxu0 0
    %144 = vmatpush1.bf16.msra.mxu0 0
    %145 = vmatprep.subr.bf16.mxu0 0
    %146 = vmatpush1.bf16.msra.mxu0 0
    %147 = vmatprep.subr.bf16.mxu0 0
    %148 = vmatpush1.bf16.msra.mxu0 0
    %149 = vmatprep.subr.bf16.mxu0 0
    %150 = vmatpush1.bf16.msra.mxu0 0
    %151 = vmatprep.subr.bf16.mxu0 0
    %152 = vmatpush1.bf16.msra.mxu0 0
    %153 = vmatprep.mubr.bf16.mxu0 0
    %154 = vmatmul.mubr.bf16.gmra.mrb[0].mxu0 %v110
    %v155 = vpop.f32.mrb[0].mxu0
    %v156 = vadd.f32 %v80, %v155
    %v157 = vpop.f32.mrb[0].mxu0
    %v158 = vpop.f32.mrb[0].mxu0
    %v159 = vadd.f32 %v80, %v158
    %v160 = vpop.f32.mrb[0].mxu0
    %161 = vmatprep.mubr.bf16.mxu0 0
    %162 = vmatmul.mubr.bf16.gmra.mrb[0].mxu0 %v113
    %v163 = vpop.f32.mrb[0].mxu0
    %v164 = vadd.f32 %v80, %v163
    %v165 = vpop.f32.mrb[0].mxu0
    %v166 = vpop.f32.mrb[0].mxu0
    %v167 = vadd.f32 %v80, %v166
    %v168 = vpop.f32.mrb[0].mxu0
    %169 = vmatprep.mubr.bf16.mxu0 0
    %170 = vmatmul.mubr.bf16.gmra.mrb[0].mxu0 %v116
    %v171 = vpop.f32.mrb[0].mxu0
    %v172 = vadd.f32 %v80, %v171
    %v173 = vpop.f32.mrb[0].mxu0
    %v174 = vpop.f32.mrb[0].mxu0
    %v175 = vadd.f32 %v80, %v174
    %v176 = vpop.f32.mrb[0].mxu0
    %177 = vmatprep.mubr.bf16.mxu0 0
    %178 = vmatmul.mubr.bf16.gmra.mrb[0].mxu0 %v119
    %v179 = vpop.f32.mrb[0].mxu0
    %v180 = vadd.f32 %v80, %v179
    %v181 = vpop.f32.mrb[0].mxu0
    %v182 = vpop.f32.mrb[0].mxu0
    %v183 = vadd.f32 %v80, %v182
    %v184 = vpop.f32.mrb[0].mxu0
    %185 = vdwg.mxu0
    %v186 = vld [vmem:[%s1] sm:$0xff]
    %v187 = vld [vmem:[%s2] sm:$0xff]
    %v188 = vpack.c.bf16 %v186, %v186
    %v193 = vunpack.c.l.b16 %v63
    %v194 = vunpack.c.l.b16 %v64
    %v195 = vunpack.c.l.b16 %v65
    %v196 = vunpack.c.l.b16 %v66
    %v197 = vpack.c.b16 %v194, %v193
    %v198 = vpack.c.b16 %v196, %v195
    %vm201 = vcmask 261120
    %v203 = vsel %vm201, %v188, 0
    %205 = vmatprep.subr.bf16.mxu0 0
    %206 = vmatpush1.bf16.msra.mxu0 %v197
    %207 = vmatprep.subr.bf16.mxu0 0
    %208 = vmatpush1.bf16.msra.mxu0 %v198
    %209 = vmatprep.subr.bf16.mxu0 0
    %210 = vmatpush1.bf16.msra.mxu0 0
    %211 = vmatprep.subr.bf16.mxu0 0
    %212 = vmatpush1.bf16.msra.mxu0 0
    %213 = vmatprep.subr.bf16.mxu0 0
    %214 = vmatpush1.bf16.msra.mxu0 0
    %215 = vmatprep.subr.bf16.mxu0 0
    %216 = vmatpush1.bf16.msra.mxu0 0
    %217 = vmatprep.subr.bf16.mxu0 0
    %218 = vmatpush1.bf16.msra.mxu0 0
    %219 = vmatprep.subr.bf16.mxu0 0
    %220 = vmatpush1.bf16.msra.mxu0 0
    %221 = vmatprep.subr.bf16.mxu0 0
    %222 = vmatpush1.bf16.msra.mxu0 0
    %223 = vmatprep.subr.bf16.mxu0 0
    %224 = vmatpush1.bf16.msra.mxu0 0
    %225 = vmatprep.subr.bf16.mxu0 0
    %226 = vmatpush1.bf16.msra.mxu0 0
    %227 = vmatprep.subr.bf16.mxu0 0
    %228 = vmatpush1.bf16.msra.mxu0 0
    %229 = vmatprep.subr.bf16.mxu0 0
    %230 = vmatpush1.bf16.msra.mxu0 0
    %231 = vmatprep.subr.bf16.mxu0 0
    %232 = vmatpush1.bf16.msra.mxu0 0
    %233 = vmatprep.subr.bf16.mxu0 0
    %234 = vmatpush1.bf16.msra.mxu0 0
    %235 = vmatprep.subr.bf16.mxu0 0
    %236 = vmatpush1.bf16.msra.mxu0 0
    %237 = vmatprep.mubr.bf16.mxu0 0
    %238 = vmatmul.mubr.bf16.gmra.mrb[0].mxu0 %v203
    %v239 = vpop.f32.mrb[0].mxu0
    %v240 = vadd.f32 0.0, %v239
    %v241 = vpop.f32.mrb[0].mxu0
    %v242 = vpop.f32.mrb[0].mxu0
    %v243 = vpop.f32.mrb[0].mxu0
    %244 = vdwg.mxu0
    %v245 = vadd.f32 %v156, %v240
    %v246 = vmul.f32 %v245, %v59
    %v247 = vtanh.pop %v246
    %v248 = vmul.f32 %v247, %v59
    %v249 = vadd.f32 %v248, %v60
    %v250 = vmul.f32 %v249, %v187
    %252 = vrot.lane.b32.xlu0 %v249, 96
    %v253 = vpop.permute.xlu0 %252
    %v255 = vmul.f32 %v249, %v253
    %257 = vrot.lane.b32.xlu0 %v255, 96
    %v258 = vpop.permute.xlu0 %257
    %v260 = vadd.f32 %v250, %v258
    %v261 = vtanh.pop %v260
    %263 = vrot.lane.b32.xlu0 %v261, 96
    %v264 = vpop.permute.xlu0 %263
    %v266 = vmul.f32 %v249, %v264
    %v267 = vpack.c.bf16 %v266, %v266
    %269 = vrot.lane.b32.xlu0 %v267, 32
    %v270 = vpop.permute.xlu0 %269
    %vm272 = vcmask 257024
    %273 = vst.msk [vmem:[#allocation2] sm:$0xf] %vm272, %v270
    %v275 = vsel %vm201, %v270, 0
    %277 = vmatprep.subr.bf16.mxu0 0
    %278 = vmatpush1.bf16.msra.mxu0 %v197
    %279 = vmatprep.subr.bf16.mxu0 0
    %280 = vmatpush1.bf16.msra.mxu0 %v198
    %281 = vmatprep.subr.bf16.mxu0 0
    %282 = vmatpush1.bf16.msra.mxu0 0
    %283 = vmatprep.subr.bf16.mxu0 0
    %284 = vmatpush1.bf16.msra.mxu0 0
    %285 = vmatprep.subr.bf16.mxu0 0
    %286 = vmatpush1.bf16.msra.mxu0 0
    %287 = vmatprep.subr.bf16.mxu0 0
    %288 = vmatpush1.bf16.msra.mxu0 0
    %289 = vmatprep.subr.bf16.mxu0 0
    %290 = vmatpush1.bf16.msra.mxu0 0
    %291 = vmatprep.subr.bf16.mxu0 0
    %292 = vmatpush1.bf16.msra.mxu0 0
    %293 = vmatprep.subr.bf16.mxu0 0
    %294 = vmatpush1.bf16.msra.mxu0 0
    %295 = vmatprep.subr.bf16.mxu0 0
    %296 = vmatpush1.bf16.msra.mxu0 0
    %297 = vmatprep.subr.bf16.mxu0 0
    %298 = vmatpush1.bf16.msra.mxu0 0
    %299 = vmatprep.subr.bf16.mxu0 0
    %300 = vmatpush1.bf16.msra.mxu0 0
    %301 = vmatprep.subr.bf16.mxu0 0
    %302 = vmatpush1.bf16.msra.mxu0 0
    %303 = vmatprep.subr.bf16.mxu0 0
    %304 = vmatpush1.bf16.msra.mxu0 0
    %305 = vmatprep.subr.bf16.mxu0 0
    %306 = vmatpush1.bf16.msra.mxu0 0
    %307 = vmatprep.subr.bf16.mxu0 0
    %308 = vmatpush1.bf16.msra.mxu0 0
    %309 = vmatprep.mubr.bf16.mxu0 0
    %310 = vmatmul.mubr.bf16.gmra.mrb[0].mxu0 %v275
    %v311 = vpop.f32.mrb[0].mxu0
    %v312 = vadd.f32 0.0, %v311
    %v313 = vpop.f32.mrb[0].mxu0
    %v314 = vpop.f32.mrb[0].mxu0
    %v315 = vpop.f32.mrb[0].mxu0
    %316 = vdwg.mxu0
    %v317 = vadd.f32 %v159, %v312
    %v318 = vmul.f32 %v317, %v59
    %v319 = vtanh.pop %v318
    %v320 = vmul.f32 %v319, %v59
    %v321 = vadd.f32 %v320, %v60
    %v322 = vmul.f32 %v321, %v260
    %324 = vrot.lane.b32.xlu0 %v321, 96
    %v325 = vpop.permute.xlu0 %324
    %v327 = vmul.f32 %v321, %v325
    %329 = vrot.lane.b32.xlu0 %v327, 96
    %v330 = vpop.permute.xlu0 %329
    %v332 = vadd.f32 %v322, %v330
    %v333 = vtanh.pop %v332
    %335 = vrot.lane.b32.xlu0 %v333, 96
    %v336 = vpop.permute.xlu0 %335
    %v338 = vmul.f32 %v321, %v336
    %v339 = vpack.c.bf16 %v338, %v338
    %v341 = vrot.slane %v339, 4
    %342 = vrot.lane.b32.xlu0 %v341, 32
    %v343 = vpop.permute.xlu0 %342
    %vm345 = vcmask 261124
    %346 = vst.msk [vmem:[#allocation2] sm:$0xf0] %vm345, %v343
    %347 = vrot.lane.b32.xlu0 %v339, 32
    %v348 = vpop.permute.xlu0 %347
    %v350 = vsel %vm201, %v348, 0
    %352 = vmatprep.subr.bf16.mxu0 0
    %353 = vmatpush1.bf16.msra.mxu0 %v197
    %354 = vmatprep.subr.bf16.mxu0 0
    %355 = vmatpush1.bf16.msra.mxu0 %v198
    %356 = vmatprep.subr.bf16.mxu0 0
    %357 = vmatpush1.bf16.msra.mxu0 0
    %358 = vmatprep.subr.bf16.mxu0 0
    %359 = vmatpush1.bf16.msra.mxu0 0
    %360 = vmatprep.subr.bf16.mxu0 0
    %361 = vmatpush1.bf16.msra.mxu0 0
    %362 = vmatprep.subr.bf16.mxu0 0
    %363 = vmatpush1.bf16.msra.mxu0 0
    %364 = vmatprep.subr.bf16.mxu0 0
    %365 = vmatpush1.bf16.msra.mxu0 0
    %366 = vmatprep.subr.bf16.mxu0 0
    %367 = vmatpush1.bf16.msra.mxu0 0
    %368 = vmatprep.subr.bf16.mxu0 0
    %369 = vmatpush1.bf16.msra.mxu0 0
    %370 = vmatprep.subr.bf16.mxu0 0
    %371 = vmatpush1.bf16.msra.mxu0 0
    %372 = vmatprep.subr.bf16.mxu0 0
    %373 = vmatpush1.bf16.msra.mxu0 0
    %374 = vmatprep.subr.bf16.mxu0 0
    %375 = vmatpush1.bf16.msra.mxu0 0
    %376 = vmatprep.subr.bf16.mxu0 0
    %377 = vmatpush1.bf16.msra.mxu0 0
    %378 = vmatprep.subr.bf16.mxu0 0
    %379 = vmatpush1.bf16.msra.mxu0 0
    %380 = vmatprep.subr.bf16.mxu0 0
    %381 = vmatpush1.bf16.msra.mxu0 0
    %382 = vmatprep.subr.bf16.mxu0 0
    %383 = vmatpush1.bf16.msra.mxu0 0
    %384 = vmatprep.mubr.bf16.mxu0 0
    %385 = vmatmul.mubr.bf16.gmra.mrb[0].mxu0 %v350
    %v386 = vpop.f32.mrb[0].mxu0
    %v387 = vadd.f32 0.0, %v386
    %v388 = vpop.f32.mrb[0].mxu0
    %v389 = vpop.f32.mrb[0].mxu0
    %v390 = vpop.f32.mrb[0].mxu0
    %391 = vdwg.mxu0
    %v392 = vadd.f32 %v164, %v387
    %v393 = vmul.f32 %v392, %v59
    %v394 = vtanh.pop %v393
    %v395 = vmul.f32 %v394, %v59
    %v396 = vadd.f32 %v395, %v60
    %v397 = vmul.f32 %v396, %v332
    %399 = vrot.lane.b32.xlu0 %v396, 96
    %v400 = vpop.permute.xlu0 %399
    %v402 = vmul.f32 %v396, %v400
    %404 = vrot.lane.b32.xlu0 %v402, 96
    %v405 = vpop.permute.xlu0 %404
    %v407 = vadd.f32 %v397, %v405
    %v408 = vtanh.pop %v407
    %410 = vrot.lane.b32.xlu0 %v408, 96
    %v411 = vpop.permute.xlu0 %410
    %v413 = vmul.f32 %v396, %v411
    %v414 = vpack.c.bf16 %v413, %v413
    %416 = vrot.lane.b32.xlu0 %v414, 32
    %v417 = vpop.permute.xlu0 %416
    %419 = vst.msk [vmem:[#allocation2 + $0x8] sm:$0xf] %vm272, %v417
    %v421 = vsel %vm201, %v417, 0
    %423 = vmatprep.subr.bf16.mxu0 0
    %424 = vmatpush1.bf16.msra.mxu0 %v197
    %425 = vmatprep.subr.bf16.mxu0 0
    %426 = vmatpush1.bf16.msra.mxu0 %v198
    %427 = vmatprep.subr.bf16.mxu0 0
    %428 = vmatpush1.bf16.msra.mxu0 0
    %429 = vmatprep.subr.bf16.mxu0 0
    %430 = vmatpush1.bf16.msra.mxu0 0
    %431 = vmatprep.subr.bf16.mxu0 0
    %432 = vmatpush1.bf16.msra.mxu0 0
    %433 = vmatprep.subr.bf16.mxu0 0
    %434 = vmatpush1.bf16.msra.mxu0 0
    %435 = vmatprep.subr.bf16.mxu0 0
    %436 = vmatpush1.bf16.msra.mxu0 0
    %437 = vmatprep.subr.bf16.mxu0 0
    %438 = vmatpush1.bf16.msra.mxu0 0
    %439 = vmatprep.subr.bf16.mxu0 0
    %440 = vmatpush1.bf16.msra.mxu0 0
    %441 = vmatprep.subr.bf16.mxu0 0
    %442 = vmatpush1.bf16.msra.mxu0 0
    %443 = vmatprep.subr.bf16.mxu0 0
    %444 = vmatpush1.bf16.msra.mxu0 0
    %445 = vmatprep.subr.bf16.mxu0 0
    %446 = vmatpush1.bf16.msra.mxu0 0
    %447 = vmatprep.subr.bf16.mxu0 0
    %448 = vmatpush1.bf16.msra.mxu0 0
    %449 = vmatprep.subr.bf16.mxu0 0
    %450 = vmatpush1.bf16.msra.mxu0 0
    %451 = vmatprep.subr.bf16.mxu0 0
    %452 = vmatpush1.bf16.msra.mxu0 0
    %453 = vmatprep.subr.bf16.mxu0 0
    %454 = vmatpush1.bf16.msra.mxu0 0
    %455 = vmatprep.mubr.bf16.mxu0 0
    %456 = vmatmul.mubr.bf16.gmra.mrb[0].mxu0 %v421
    %v457 = vpop.f32.mrb[0].mxu0
    %v458 = vadd.f32 0.0, %v457
    %v459 = vpop.f32.mrb[0].mxu0
    %v460 = vpop.f32.mrb[0].mxu0
    %v461 = vpop.f32.mrb[0].mxu0
    %462 = vdwg.mxu0
    %v463 = vadd.f32 %v167, %v458
    %v464 = vmul.f32 %v463, %v59
    %v465 = vtanh.pop %v464
    %v466 = vmul.f32 %v465, %v59
    %v467 = vadd.f32 %v466, %v60
    %v468 = vmul.f32 %v467, %v407
    %470 = vrot.lane.b32.xlu0 %v467, 96
    %v471 = vpop.permute.xlu0 %470
    %v473 = vmul.f32 %v467, %v471
    %475 = vrot.lane.b32.xlu0 %v473, 96
    %v476 = vpop.permute.xlu0 %475
    %v478 = vadd.f32 %v468, %v476
    %v479 = vtanh.pop %v478
    %481 = vrot.lane.b32.xlu0 %v479, 96
    %v482 = vpop.permute.xlu0 %481
    %v484 = vmul.f32 %v467, %v482
    %v485 = vpack.c.bf16 %v484, %v484
    %v487 = vrot.slane %v485, 4
    %488 = vrot.lane.b32.xlu0 %v487, 32
    %v489 = vpop.permute.xlu0 %488
    %491 = vst.msk [vmem:[#allocation2 + $0x8] sm:$0xf0] %vm345, %v489
    %492 = vrot.lane.b32.xlu0 %v485, 32
    %v493 = vpop.permute.xlu0 %492
    %v495 = vsel %vm201, %v493, 0
    %497 = vmatprep.subr.bf16.mxu0 0
    %498 = vmatpush1.bf16.msra.mxu0 %v197
    %499 = vmatprep.subr.bf16.mxu0 0
    %500 = vmatpush1.bf16.msra.mxu0 %v198
    %501 = vmatprep.subr.bf16.mxu0 0
    %502 = vmatpush1.bf16.msra.mxu0 0
    %503 = vmatprep.subr.bf16.mxu0 0
    %504 = vmatpush1.bf16.msra.mxu0 0
    %505 = vmatprep.subr.bf16.mxu0 0
    %506 = vmatpush1.bf16.msra.mxu0 0
    %507 = vmatprep.subr.bf16.mxu0 0
    %508 = vmatpush1.bf16.msra.mxu0 0
    %509 = vmatprep.subr.bf16.mxu0 0
    %510 = vmatpush1.bf16.msra.mxu0 0
    %511 = vmatprep.subr.bf16.mxu0 0
    %512 = vmatpush1.bf16.msra.mxu0 0
    %513 = vmatprep.subr.bf16.mxu0 0
    %514 = vmatpush1.bf16.msra.mxu0 0
    %515 = vmatprep.subr.bf16.mxu0 0
    %516 = vmatpush1.bf16.msra.mxu0 0
    %517 = vmatprep.subr.bf16.mxu0 0
    %518 = vmatpush1.bf16.msra.mxu0 0
    %519 = vmatprep.subr.bf16.mxu0 0
    %520 = vmatpush1.bf16.msra.mxu0 0
    %521 = vmatprep.subr.bf16.mxu0 0
    %522 = vmatpush1.bf16.msra.mxu0 0
    %523 = vmatprep.subr.bf16.mxu0 0
    %524 = vmatpush1.bf16.msra.mxu0 0
    %525 = vmatprep.subr.bf16.mxu0 0
    %526 = vmatpush1.bf16.msra.mxu0 0
    %527 = vmatprep.subr.bf16.mxu0 0
    %528 = vmatpush1.bf16.msra.mxu0 0
    %529 = vmatprep.mubr.bf16.mxu0 0
    %530 = vmatmul.mubr.bf16.gmra.mrb[0].mxu0 %v495
    %v531 = vpop.f32.mrb[0].mxu0
    %v532 = vadd.f32 0.0, %v531
    %v533 = vpop.f32.mrb[0].mxu0
    %v534 = vpop.f32.mrb[0].mxu0
    %v535 = vpop.f32.mrb[0].mxu0
    %536 = vdwg.mxu0
    %v537 = vadd.f32 %v172, %v532
    %v538 = vmul.f32 %v537, %v59
    %v539 = vtanh.pop %v538
    %v540 = vmul.f32 %v539, %v59
    %v541 = vadd.f32 %v540, %v60
    %v542 = vmul.f32 %v541, %v478
    %544 = vrot.lane.b32.xlu0 %v541, 96
    %v545 = vpop.permute.xlu0 %544
    %v547 = vmul.f32 %v541, %v545
    %549 = vrot.lane.b32.xlu0 %v547, 96
    %v550 = vpop.permute.xlu0 %549
    %v552 = vadd.f32 %v542, %v550
    %v553 = vtanh.pop %v552
    %555 = vrot.lane.b32.xlu0 %v553, 96
    %v556 = vpop.permute.xlu0 %555
    %v558 = vmul.f32 %v541, %v556
    %v559 = vpack.c.bf16 %v558, %v558
    %561 = vrot.lane.b32.xlu0 %v559, 32
    %v562 = vpop.permute.xlu0 %561
    %564 = vst.msk [vmem:[#allocation2 + $0x10] sm:$0xf] %vm272, %v562
    %v566 = vsel %vm201, %v562, 0
    %568 = vmatprep.subr.bf16.mxu0 0
    %569 = vmatpush1.bf16.msra.mxu0 %v197
    %570 = vmatprep.subr.bf16.mxu0 0
    %571 = vmatpush1.bf16.msra.mxu0 %v198
    %572 = vmatprep.subr.bf16.mxu0 0
    %573 = vmatpush1.bf16.msra.mxu0 0
    %574 = vmatprep.subr.bf16.mxu0 0
    %575 = vmatpush1.bf16.msra.mxu0 0
    %576 = vmatprep.subr.bf16.mxu0 0
    %577 = vmatpush1.bf16.msra.mxu0 0
    %578 = vmatprep.subr.bf16.mxu0 0
    %579 = vmatpush1.bf16.msra.mxu0 0
    %580 = vmatprep.subr.bf16.mxu0 0
    %581 = vmatpush1.bf16.msra.mxu0 0
    %582 = vmatprep.subr.bf16.mxu0 0
    %583 = vmatpush1.bf16.msra.mxu0 0
    %584 = vmatprep.subr.bf16.mxu0 0
    %585 = vmatpush1.bf16.msra.mxu0 0
    %586 = vmatprep.subr.bf16.mxu0 0
    %587 = vmatpush1.bf16.msra.mxu0 0
    %588 = vmatprep.subr.bf16.mxu0 0
    %589 = vmatpush1.bf16.msra.mxu0 0
    %590 = vmatprep.subr.bf16.mxu0 0
    %591 = vmatpush1.bf16.msra.mxu0 0
    %592 = vmatprep.subr.bf16.mxu0 0
    %593 = vmatpush1.bf16.msra.mxu0 0
    %594 = vmatprep.subr.bf16.mxu0 0
    %595 = vmatpush1.bf16.msra.mxu0 0
    %596 = vmatprep.subr.bf16.mxu0 0
    %597 = vmatpush1.bf16.msra.mxu0 0
    %598 = vmatprep.subr.bf16.mxu0 0
    %599 = vmatpush1.bf16.msra.mxu0 0
    %600 = vmatprep.mubr.bf16.mxu0 0
    %601 = vmatmul.mubr.bf16.gmra.mrb[0].mxu0 %v566
    %v602 = vpop.f32.mrb[0].mxu0
    %v603 = vadd.f32 0.0, %v602
    %v604 = vpop.f32.mrb[0].mxu0
    %v605 = vpop.f32.mrb[0].mxu0
    %v606 = vpop.f32.mrb[0].mxu0
    %607 = vdwg.mxu0
    %v608 = vadd.f32 %v175, %v603
    %v609 = vmul.f32 %v608, %v59
    %v610 = vtanh.pop %v609
    %v611 = vmul.f32 %v610, %v59
    %v612 = vadd.f32 %v611, %v60
    %v613 = vmul.f32 %v612, %v552
    %615 = vrot.lane.b32.xlu0 %v612, 96
    %v616 = vpop.permute.xlu0 %615
    %v618 = vmul.f32 %v612, %v616
    %620 = vrot.lane.b32.xlu0 %v618, 96
    %v621 = vpop.permute.xlu0 %620
    %v623 = vadd.f32 %v613, %v621
    %v624 = vtanh.pop %v623
    %626 = vrot.lane.b32.xlu0 %v624, 96
    %v627 = vpop.permute.xlu0 %626
    %v629 = vmul.f32 %v612, %v627
    %v630 = vpack.c.bf16 %v629, %v629
    %v632 = vrot.slane %v630, 4
    %633 = vrot.lane.b32.xlu0 %v632, 32
    %v634 = vpop.permute.xlu0 %633
    %636 = vst.msk [vmem:[#allocation2 + $0x10] sm:$0xf0] %vm345, %v634
    %637 = vrot.lane.b32.xlu0 %v630, 32
    %v638 = vpop.permute.xlu0 %637
    %v640 = vsel %vm201, %v638, 0
    %642 = vmatprep.subr.bf16.mxu0 0
    %643 = vmatpush1.bf16.msra.mxu0 %v197
    %644 = vmatprep.subr.bf16.mxu0 0
    %645 = vmatpush1.bf16.msra.mxu0 %v198
    %646 = vmatprep.subr.bf16.mxu0 0
    %647 = vmatpush1.bf16.msra.mxu0 0
    %648 = vmatprep.subr.bf16.mxu0 0
    %649 = vmatpush1.bf16.msra.mxu0 0
    %650 = vmatprep.subr.bf16.mxu0 0
    %651 = vmatpush1.bf16.msra.mxu0 0
    %652 = vmatprep.subr.bf16.mxu0 0
    %653 = vmatpush1.bf16.msra.mxu0 0
    %654 = vmatprep.subr.bf16.mxu0 0
    %655 = vmatpush1.bf16.msra.mxu0 0
    %656 = vmatprep.subr.bf16.mxu0 0
    %657 = vmatpush1.bf16.msra.mxu0 0
    %658 = vmatprep.subr.bf16.mxu0 0
    %659 = vmatpush1.bf16.msra.mxu0 0
    %660 = vmatprep.subr.bf16.mxu0 0
    %661 = vmatpush1.bf16.msra.mxu0 0
    %662 = vmatprep.subr.bf16.mxu0 0
    %663 = vmatpush1.bf16.msra.mxu0 0
    %664 = vmatprep.subr.bf16.mxu0 0
    %665 = vmatpush1.bf16.msra.mxu0 0
    %666 = vmatprep.subr.bf16.mxu0 0
    %667 = vmatpush1.bf16.msra.mxu0 0
    %668 = vmatprep.subr.bf16.mxu0 0
    %669 = vmatpush1.bf16.msra.mxu0 0
    %670 = vmatprep.subr.bf16.mxu0 0
    %671 = vmatpush1.bf16.msra.mxu0 0
    %672 = vmatprep.subr.bf16.mxu0 0
    %673 = vmatpush1.bf16.msra.mxu0 0
    %674 = vmatprep.mubr.bf16.mxu0 0
    %675 = vmatmul.mubr.bf16.gmra.mrb[0].mxu0 %v640
    %v676 = vpop.f32.mrb[0].mxu0
    %v677 = vadd.f32 0.0, %v676
    %v678 = vpop.f32.mrb[0].mxu0
    %v679 = vpop.f32.mrb[0].mxu0
    %v680 = vpop.f32.mrb[0].mxu0
    %681 = vdwg.mxu0
    %v682 = vadd.f32 %v180, %v677
    %v683 = vmul.f32 %v682, %v59
    %v684 = vtanh.pop %v683
    %v685 = vmul.f32 %v684, %v59
    %v686 = vadd.f32 %v685, %v60
    %v687 = vmul.f32 %v686, %v623
    %689 = vrot.lane.b32.xlu0 %v686, 96
    %v690 = vpop.permute.xlu0 %689
    %v692 = vmul.f32 %v686, %v690
    %694 = vrot.lane.b32.xlu0 %v692, 96
    %v695 = vpop.permute.xlu0 %694
    %v697 = vadd.f32 %v687, %v695
    %v698 = vtanh.pop %v697
    %700 = vrot.lane.b32.xlu0 %v698, 96
    %v701 = vpop.permute.xlu0 %700
    %v703 = vmul.f32 %v686, %v701
    %v704 = vpack.c.bf16 %v703, %v703
    %706 = vrot.lane.b32.xlu0 %v704, 32
    %v707 = vpop.permute.xlu0 %706
    %709 = vst.msk [vmem:[#allocation2 + $0x18] sm:$0xf] %vm272, %v707
    %v711 = vsel %vm201, %v707, 0
    %713 = vmatprep.subr.bf16.mxu0 0
    %714 = vmatpush1.bf16.msra.mxu0 %v197
    %715 = vmatprep.subr.bf16.mxu0 0
    %716 = vmatpush1.bf16.msra.mxu0 %v198
    %717 = vmatprep.subr.bf16.mxu0 0
    %718 = vmatpush1.bf16.msra.mxu0 0
    %719 = vmatprep.subr.bf16.mxu0 0
    %720 = vmatpush1.bf16.msra.mxu0 0
    %721 = vmatprep.subr.bf16.mxu0 0
    %722 = vmatpush1.bf16.msra.mxu0 0
    %723 = vmatprep.subr.bf16.mxu0 0
    %724 = vmatpush1.bf16.msra.mxu0 0
    %725 = vmatprep.subr.bf16.mxu0 0
    %726 = vmatpush1.bf16.msra.mxu0 0
    %727 = vmatprep.subr.bf16.mxu0 0
    %728 = vmatpush1.bf16.msra.mxu0 0
    %729 = vmatprep.subr.bf16.mxu0 0
    %730 = vmatpush1.bf16.msra.mxu0 0
    %731 = vmatprep.subr.bf16.mxu0 0
    %732 = vmatpush1.bf16.msra.mxu0 0
    %733 = vmatprep.subr.bf16.mxu0 0
    %734 = vmatpush1.bf16.msra.mxu0 0
    %735 = vmatprep.subr.bf16.mxu0 0
    %736 = vmatpush1.bf16.msra.mxu0 0
    %737 = vmatprep.subr.bf16.mxu0 0
    %738 = vmatpush1.bf16.msra.mxu0 0
    %739 = vmatprep.subr.bf16.mxu0 0
    %740 = vmatpush1.bf16.msra.mxu0 0
    %741 = vmatprep.subr.bf16.mxu0 0
    %742 = vmatpush1.bf16.msra.mxu0 0
    %743 = vmatprep.subr.bf16.mxu0 0
    %744 = vmatpush1.bf16.msra.mxu0 0
    %745 = vmatprep.mubr.bf16.mxu0 0
    %746 = vmatmul.mubr.bf16.gmra.mrb[0].mxu0 %v711
    %v747 = vpop.f32.mrb[0].mxu0
    %v748 = vadd.f32 0.0, %v747
    %v749 = vpop.f32.mrb[0].mxu0
    %v750 = vpop.f32.mrb[0].mxu0
    %v751 = vpop.f32.mrb[0].mxu0
    %752 = vdwg.mxu0
    %v753 = vadd.f32 %v183, %v748
    %v754 = vmul.f32 %v753, %v59
    %v755 = vtanh.pop %v754
    %v756 = vmul.f32 %v755, %v59
    %v757 = vadd.f32 %v756, %v60
    %v758 = vmul.f32 %v757, %v697
    %760 = vrot.lane.b32.xlu0 %v757, 96
    %v761 = vpop.permute.xlu0 %760
    %v763 = vmul.f32 %v757, %v761
    %765 = vrot.lane.b32.xlu0 %v763, 96
    %v766 = vpop.permute.xlu0 %765
    %v768 = vadd.f32 %v758, %v766
    %v769 = vtanh.pop %v768
    %771 = vrot.lane.b32.xlu0 %v769, 96
    %v772 = vpop.permute.xlu0 %771
    %v774 = vmul.f32 %v757, %v772
    %v775 = vpack.c.bf16 %v774, %v774
    %v777 = vrot.slane %v775, 4
    %778 = vrot.lane.b32.xlu0 %v777, 32
    %v779 = vpop.permute.xlu0 %778
    %781 = vst.msk [vmem:[#allocation2 + $0x18] sm:$0xf0] %vm345, %v779
    %v782 = vld [vmem:[%s6] sm:$0xf]
    %v783 = vld [vmem:[%s6 + $0x4] sm:$0xf]
    %v784 = vld [vmem:[%s6 + $0x8] sm:$0xf]
    %v785 = vld [vmem:[%s6 + $0xc] sm:$0xf]
    %v786 = vld [vmem:[%s7] sm:$0xf]
    %v787 = vld [vmem:[%s7 + $0x4] sm:$0xf]
    %v788 = vld [vmem:[%s7 + $0x8] sm:$0xf]
    %v789 = vld [vmem:[%s7 + $0xc] sm:$0xf]
    %v790 = vld [vmem:[%s8] sm:$0x1]
    %v791 = vld [vmem:[#allocation2] sm:$0xff]
    %v792 = vld [vmem:[#allocation2 + $0x8] sm:$0xff]
    %v793 = vld [vmem:[#allocation2 + $0x10] sm:$0xff]
    %v794 = vld [vmem:[#allocation2 + $0x18] sm:$0xff]
    %v796 = vlaneseq
    %v797 = vshrl.u32 %v796, 7
    %v798 = vsub.s32 0, %v797
    %v799 = vrot.slane %v790, %v798
    %v805 = vunpack.c.l.b16 %v782
    %v806 = vunpack.c.l.b16 %v783
    %v807 = vunpack.c.l.b16 %v784
    %v808 = vunpack.c.l.b16 %v785
    %v809 = vpack.c.b16 %v806, %v805
    %v810 = vpack.c.b16 %v808, %v807
    %v814 = vsel %vm201, %v791, 0
    %v817 = vsel %vm201, %v792, 0
    %v820 = vsel %vm201, %v793, 0
    %v823 = vsel %vm201, %v794, 0
    %825 = vmatprep.subr.bf16.mxu0 0
    %826 = vmatpush1.bf16.msra.mxu0 %v809
    %827 = vmatprep.subr.bf16.mxu0 0
    %828 = vmatpush1.bf16.msra.mxu0 %v810
    %829 = vmatprep.subr.bf16.mxu0 0
    %830 = vmatpush1.bf16.msra.mxu0 0
    %831 = vmatprep.subr.bf16.mxu0 0
    %832 = vmatpush1.bf16.msra.mxu0 0
    %833 = vmatprep.subr.bf16.mxu0 0
    %834 = vmatpush1.bf16.msra.mxu0 0
    %835 = vmatprep.subr.bf16.mxu0 0
    %836 = vmatpush1.bf16.msra.mxu0 0
    %837 = vmatprep.subr.bf16.mxu0 0
    %838 = vmatpush1.bf16.msra.mxu0 0
    %839 = vmatprep.subr.bf16.mxu0 0
    %840 = vmatpush1.bf16.msra.mxu0 0
    %841 = vmatprep.subr.bf16.mxu0 0
    %842 = vmatpush1.bf16.msra.mxu0 0
    %843 = vmatprep.subr.bf16.mxu0 0
    %844 = vmatpush1.bf16.msra.mxu0 0
    %845 = vmatprep.subr.bf16.mxu0 0
    %846 = vmatpush1.bf16.msra.mxu0 0
    %847 = vmatprep.subr.bf16.mxu0 0
    %848 = vmatpush1.bf16.msra.mxu0 0
    %849 = vmatprep.subr.bf16.mxu0 0
    %850 = vmatpush1.bf16.msra.mxu0 0
    %851 = vmatprep.subr.bf16.mxu0 0
    %852 = vmatpush1.bf16.msra.mxu0 0
    %853 = vmatprep.subr.bf16.mxu0 0
    %854 = vmatpush1.bf16.msra.mxu0 0
    %855 = vmatprep.subr.bf16.mxu0 0
    %856 = vmatpush1.bf16.msra.mxu0 0
    %857 = vmatprep.mubr.bf16.mxu0 0
    %858 = vmatmul.mubr.bf16.gmra.mrb[0].mxu0 %v814
    %v859 = vpop.f32.mrb[0].mxu0
    %v860 = vadd.f32 %v799, %v859
    %v861 = vpop.f32.mrb[0].mxu0
    %v862 = vpop.f32.mrb[0].mxu0
    %v863 = vadd.f32 %v799, %v862
    %v864 = vpop.f32.mrb[0].mxu0
    %865 = vmatprep.mubr.bf16.mxu0 0
    %866 = vmatmul.mubr.bf16.gmra.mrb[0].mxu0 %v817
    %v867 = vpop.f32.mrb[0].mxu0
    %v868 = vadd.f32 %v799, %v867
    %v869 = vpop.f32.mrb[0].mxu0
    %v870 = vpop.f32.mrb[0].mxu0
    %v871 = vadd.f32 %v799, %v870
    %v872 = vpop.f32.mrb[0].mxu0
    %873 = vmatprep.mubr.bf16.mxu0 0
    %874 = vmatmul.mubr.bf16.gmra.mrb[0].mxu0 %v820
    %v875 = vpop.f32.mrb[0].mxu0
    %v876 = vadd.f32 %v799, %v875
    %v877 = vpop.f32.mrb[0].mxu0
    %v878 = vpop.f32.mrb[0].mxu0
    %v879 = vadd.f32 %v799, %v878
    %v880 = vpop.f32.mrb[0].mxu0
    %881 = vmatprep.mubr.bf16.mxu0 0
    %882 = vmatmul.mubr.bf16.gmra.mrb[0].mxu0 %v823
    %v883 = vpop.f32.mrb[0].mxu0
    %v884 = vadd.f32 %v799, %v883
    %v885 = vpop.f32.mrb[0].mxu0
    %v886 = vpop.f32.mrb[0].mxu0
    %v887 = vadd.f32 %v799, %v886
    %v888 = vpop.f32.mrb[0].mxu0
    %889 = vdwg.mxu0
    %s890 = scalar_lea.vmem %s1, 8
    %v891 = vld [vmem:[%s890] sm:$0xff]
    %s892 = scalar_lea.vmem %s2, 8
    %v893 = vld [vmem:[%s892] sm:$0xff]
    %v894 = vpack.c.bf16 %v891, %v891
    %v899 = vunpack.c.l.b16 %v786
    %v900 = vunpack.c.l.b16 %v787
    %v901 = vunpack.c.l.b16 %v788
    %v902 = vunpack.c.l.b16 %v789
    %v903 = vpack.c.b16 %v900, %v899
    %v904 = vpack.c.b16 %v902, %v901
    %v908 = vsel %vm201, %v894, 0
    %910 = vmatprep.subr.bf16.mxu0 0
    %911 = vmatpush1.bf16.msra.mxu0 %v903
    %912 = vmatprep.subr.bf16.mxu0 0
    %913 = vmatpush1.bf16.msra.mxu0 %v904
    %914 = vmatprep.subr.bf16.mxu0 0
    %915 = vmatpush1.bf16.msra.mxu0 0
    %916 = vmatprep.subr.bf16.mxu0 0
    %917 = vmatpush1.bf16.msra.mxu0 0
    %918 = vmatprep.subr.bf16.mxu0 0
    %919 = vmatpush1.bf16.msra.mxu0 0
    %920 = vmatprep.subr.bf16.mxu0 0
    %921 = vmatpush1.bf16.msra.mxu0 0
    %922 = vmatprep.subr.bf16.mxu0 0
    %923 = vmatpush1.bf16.msra.mxu0 0
    %924 = vmatprep.subr.bf16.mxu0 0
    %925 = vmatpush1.bf16.msra.mxu0 0
    %926 = vmatprep.subr.bf16.mxu0 0
    %927 = vmatpush1.bf16.msra.mxu0 0
    %928 = vmatprep.subr.bf16.mxu0 0
    %929 = vmatpush1.bf16.msra.mxu0 0
    %930 = vmatprep.subr.bf16.mxu0 0
    %931 = vmatpush1.bf16.msra.mxu0 0
    %932 = vmatprep.subr.bf16.mxu0 0
    %933 = vmatpush1.bf16.msra.mxu0 0
    %934 = vmatprep.subr.bf16.mxu0 0
    %935 = vmatpush1.bf16.msra.mxu0 0
    %936 = vmatprep.subr.bf16.mxu0 0
    %937 = vmatpush1.bf16.msra.mxu0 0
    %938 = vmatprep.subr.bf16.mxu0 0
    %939 = vmatpush1.bf16.msra.mxu0 0
    %940 = vmatprep.subr.bf16.mxu0 0
    %941 = vmatpush1.bf16.msra.mxu0 0
    %942 = vmatprep.mubr.bf16.mxu0 0
    %943 = vmatmul.mubr.bf16.gmra.mrb[0].mxu0 %v908
    %v944 = vpop.f32.mrb[0].mxu0
    %v945 = vadd.f32 0.0, %v944
    %v946 = vpop.f32.mrb[0].mxu0
    %v947 = vpop.f32.mrb[0].mxu0
    %v948 = vpop.f32.mrb[0].mxu0
    %949 = vdwg.mxu0
    %v950 = vadd.f32 %v860, %v945
    %v951 = vmul.f32 %v950, %v59
    %v952 = vtanh.pop %v951
    %v953 = vmul.f32 %v952, %v59
    %v954 = vadd.f32 %v953, %v60
    %v955 = vmul.f32 %v954, %v893
    %957 = vrot.lane.b32.xlu0 %v954, 96
    %v958 = vpop.permute.xlu0 %957
    %v960 = vmul.f32 %v954, %v958
    %962 = vrot.lane.b32.xlu0 %v960, 96
    %v963 = vpop.permute.xlu0 %962
    %v965 = vadd.f32 %v955, %v963
    %v966 = vtanh.pop %v965
    %968 = vrot.lane.b32.xlu0 %v966, 96
    %v969 = vpop.permute.xlu0 %968
    %v971 = vmul.f32 %v954, %v969
    %v972 = vpack.c.bf16 %v971, %v971
    %974 = vrot.lane.b32.xlu0 %v972, 32
    %v975 = vpop.permute.xlu0 %974
    %v977 = vsel %vm201, %v975, 0
    %979 = vmatprep.subr.bf16.mxu0 0
    %980 = vmatpush1.bf16.msra.mxu0 %v903
    %981 = vmatprep.subr.bf16.mxu0 0
    %982 = vmatpush1.bf16.msra.mxu0 %v904
    %983 = vmatprep.subr.bf16.mxu0 0
    %984 = vmatpush1.bf16.msra.mxu0 0
    %985 = vmatprep.subr.bf16.mxu0 0
    %986 = vmatpush1.bf16.msra.mxu0 0
    %987 = vmatprep.subr.bf16.mxu0 0
    %988 = vmatpush1.bf16.msra.mxu0 0
    %989 = vmatprep.subr.bf16.mxu0 0
    %990 = vmatpush1.bf16.msra.mxu0 0
    %991 = vmatprep.subr.bf16.mxu0 0
    %992 = vmatpush1.bf16.msra.mxu0 0
    %993 = vmatprep.subr.bf16.mxu0 0
    %994 = vmatpush1.bf16.msra.mxu0 0
    %995 = vmatprep.subr.bf16.mxu0 0
    %996 = vmatpush1.bf16.msra.mxu0 0
    %997 = vmatprep.subr.bf16.mxu0 0
    %998 = vmatpush1.bf16.msra.mxu0 0
    %999 = vmatprep.subr.bf16.mxu0 0
    %1000 = vmatpush1.bf16.msra.mxu0 0
    %1001 = vmatprep.subr.bf16.mxu0 0
    %1002 = vmatpush1.bf16.msra.mxu0 0
    %1003 = vmatprep.subr.bf16.mxu0 0
    %1004 = vmatpush1.bf16.msra.mxu0 0
    %1005 = vmatprep.subr.bf16.mxu0 0
    %1006 = vmatpush1.bf16.msra.mxu0 0
    %1007 = vmatprep.subr.bf16.mxu0 0
    %1008 = vmatpush1.bf16.msra.mxu0 0
    %1009 = vmatprep.subr.bf16.mxu0 0
    %1010 = vmatpush1.bf16.msra.mxu0 0
    %1011 = vmatprep.mubr.bf16.mxu0 0
    %1012 = vmatmul.mubr.bf16.gmra.mrb[0].mxu0 %v977
    %v1013 = vpop.f32.mrb[0].mxu0
    %v1014 = vadd.f32 0.0, %v1013
    %v1015 = vpop.f32.mrb[0].mxu0
    %v1016 = vpop.f32.mrb[0].mxu0
    %v1017 = vpop.f32.mrb[0].mxu0
    %1018 = vdwg.mxu0
    %v1019 = vadd.f32 %v863, %v1014
    %v1020 = vmul.f32 %v1019, %v59
    %v1021 = vtanh.pop %v1020
    %v1022 = vmul.f32 %v1021, %v59
    %v1023 = vadd.f32 %v1022, %v60
    %v1024 = vmul.f32 %v1023, %v965
    %1026 = vrot.lane.b32.xlu0 %v1023, 96
    %v1027 = vpop.permute.xlu0 %1026
    %v1029 = vmul.f32 %v1023, %v1027
    %1031 = vrot.lane.b32.xlu0 %v1029, 96
    %v1032 = vpop.permute.xlu0 %1031
    %v1034 = vadd.f32 %v1024, %v1032
    %v1035 = vtanh.pop %v1034
    %1037 = vrot.lane.b32.xlu0 %v1035, 96
    %v1038 = vpop.permute.xlu0 %1037
    %v1040 = vmul.f32 %v1023, %v1038
    %v1041 = vpack.c.bf16 %v1040, %v1040
    %1043 = vrot.lane.b32.xlu0 %v1041, 32
    %v1044 = vpop.permute.xlu0 %1043
    %v1046 = vsel %vm201, %v1044, 0
    %1048 = vmatprep.subr.bf16.mxu0 0
    %1049 = vmatpush1.bf16.msra.mxu0 %v903
    %1050 = vmatprep.subr.bf16.mxu0 0
    %1051 = vmatpush1.bf16.msra.mxu0 %v904
    %1052 = vmatprep.subr.bf16.mxu0 0
    %1053 = vmatpush1.bf16.msra.mxu0 0
    %1054 = vmatprep.subr.bf16.mxu0 0
    %1055 = vmatpush1.bf16.msra.mxu0 0
    %1056 = vmatprep.subr.bf16.mxu0 0
    %1057 = vmatpush1.bf16.msra.mxu0 0
    %1058 = vmatprep.subr.bf16.mxu0 0
    %1059 = vmatpush1.bf16.msra.mxu0 0
    %1060 = vmatprep.subr.bf16.mxu0 0
    %1061 = vmatpush1.bf16.msra.mxu0 0
    %1062 = vmatprep.subr.bf16.mxu0 0
    %1063 = vmatpush1.bf16.msra.mxu0 0
    %1064 = vmatprep.subr.bf16.mxu0 0
    %1065 = vmatpush1.bf16.msra.mxu0 0
    %1066 = vmatprep.subr.bf16.mxu0 0
    %1067 = vmatpush1.bf16.msra.mxu0 0
    %1068 = vmatprep.subr.bf16.mxu0 0
    %1069 = vmatpush1.bf16.msra.mxu0 0
    %1070 = vmatprep.subr.bf16.mxu0 0
    %1071 = vmatpush1.bf16.msra.mxu0 0
    %1072 = vmatprep.subr.bf16.mxu0 0
    %1073 = vmatpush1.bf16.msra.mxu0 0
    %1074 = vmatprep.subr.bf16.mxu0 0
    %1075 = vmatpush1.bf16.msra.mxu0 0
    %1076 = vmatprep.subr.bf16.mxu0 0
    %1077 = vmatpush1.bf16.msra.mxu0 0
    %1078 = vmatprep.subr.bf16.mxu0 0
    %1079 = vmatpush1.bf16.msra.mxu0 0
    %1080 = vmatprep.mubr.bf16.mxu0 0
    %1081 = vmatmul.mubr.bf16.gmra.mrb[0].mxu0 %v1046
    %v1082 = vpop.f32.mrb[0].mxu0
    %v1083 = vadd.f32 0.0, %v1082
    %v1084 = vpop.f32.mrb[0].mxu0
    %v1085 = vpop.f32.mrb[0].mxu0
    %v1086 = vpop.f32.mrb[0].mxu0
    %1087 = vdwg.mxu0
    %v1088 = vadd.f32 %v868, %v1083
    %v1089 = vmul.f32 %v1088, %v59
    %v1090 = vtanh.pop %v1089
    %v1091 = vmul.f32 %v1090, %v59
    %v1092 = vadd.f32 %v1091, %v60
    %v1093 = vmul.f32 %v1092, %v1034
    %1095 = vrot.lane.b32.xlu0 %v1092, 96
    %v1096 = vpop.permute.xlu0 %1095
    %v1098 = vmul.f32 %v1092, %v1096
    %1100 = vrot.lane.b32.xlu0 %v1098, 96
    %v1101 = vpop.permute.xlu0 %1100
    %v1103 = vadd.f32 %v1093, %v1101
    %v1104 = vtanh.pop %v1103
    %1106 = vrot.lane.b32.xlu0 %v1104, 96
    %v1107 = vpop.permute.xlu0 %1106
    %v1109 = vmul.f32 %v1092, %v1107
    %v1110 = vpack.c.bf16 %v1109, %v1109
    %1112 = vrot.lane.b32.xlu0 %v1110, 32
    %v1113 = vpop.permute.xlu0 %1112
    %v1115 = vsel %vm201, %v1113, 0
    %1117 = vmatprep.subr.bf16.mxu0 0
    %1118 = vmatpush1.bf16.msra.mxu0 %v903
    %1119 = vmatprep.subr.bf16.mxu0 0
    %1120 = vmatpush1.bf16.msra.mxu0 %v904
    %1121 = vmatprep.subr.bf16.mxu0 0
    %1122 = vmatpush1.bf16.msra.mxu0 0
    %1123 = vmatprep.subr.bf16.mxu0 0
    %1124 = vmatpush1.bf16.msra.mxu0 0
    %1125 = vmatprep.subr.bf16.mxu0 0
    %1126 = vmatpush1.bf16.msra.mxu0 0
    %1127 = vmatprep.subr.bf16.mxu0 0
    %1128 = vmatpush1.bf16.msra.mxu0 0
    %1129 = vmatprep.subr.bf16.mxu0 0
    %1130 = vmatpush1.bf16.msra.mxu0 0
    %1131 = vmatprep.subr.bf16.mxu0 0
    %1132 = vmatpush1.bf16.msra.mxu0 0
    %1133 = vmatprep.subr.bf16.mxu0 0
    %1134 = vmatpush1.bf16.msra.mxu0 0
    %1135 = vmatprep.subr.bf16.mxu0 0
    %1136 = vmatpush1.bf16.msra.mxu0 0
    %1137 = vmatprep.subr.bf16.mxu0 0
    %1138 = vmatpush1.bf16.msra.mxu0 0
    %1139 = vmatprep.subr.bf16.mxu0 0
    %1140 = vmatpush1.bf16.msra.mxu0 0
    %1141 = vmatprep.subr.bf16.mxu0 0
    %1142 = vmatpush1.bf16.msra.mxu0 0
    %1143 = vmatprep.subr.bf16.mxu0 0
    %1144 = vmatpush1.bf16.msra.mxu0 0
    %1145 = vmatprep.subr.bf16.mxu0 0
    %1146 = vmatpush1.bf16.msra.mxu0 0
    %1147 = vmatprep.subr.bf16.mxu0 0
    %1148 = vmatpush1.bf16.msra.mxu0 0
    %1149 = vmatprep.mubr.bf16.mxu0 0
    %1150 = vmatmul.mubr.bf16.gmra.mrb[0].mxu0 %v1115
    %v1151 = vpop.f32.mrb[0].mxu0
    %v1152 = vadd.f32 0.0, %v1151
    %v1153 = vpop.f32.mrb[0].mxu0
    %v1154 = vpop.f32.mrb[0].mxu0
    %v1155 = vpop.f32.mrb[0].mxu0
    %1156 = vdwg.mxu0
    %v1157 = vadd.f32 %v871, %v1152
    %v1158 = vmul.f32 %v1157, %v59
    %v1159 = vtanh.pop %v1158
    %v1160 = vmul.f32 %v1159, %v59
    %v1161 = vadd.f32 %v1160, %v60
    %v1162 = vmul.f32 %v1161, %v1103
    %1164 = vrot.lane.b32.xlu0 %v1161, 96
    %v1165 = vpop.permute.xlu0 %1164
    %v1167 = vmul.f32 %v1161, %v1165
    %1169 = vrot.lane.b32.xlu0 %v1167, 96
    %v1170 = vpop.permute.xlu0 %1169
    %v1172 = vadd.f32 %v1162, %v1170
    %v1173 = vtanh.pop %v1172
    %1175 = vrot.lane.b32.xlu0 %v1173, 96
    %v1176 = vpop.permute.xlu0 %1175
    %v1178 = vmul.f32 %v1161, %v1176
    %v1179 = vpack.c.bf16 %v1178, %v1178
    %1181 = vrot.lane.b32.xlu0 %v1179, 32
    %v1182 = vpop.permute.xlu0 %1181
    %v1184 = vsel %vm201, %v1182, 0
    %1186 = vmatprep.subr.bf16.mxu0 0
    %1187 = vmatpush1.bf16.msra.mxu0 %v903
    %1188 = vmatprep.subr.bf16.mxu0 0
    %1189 = vmatpush1.bf16.msra.mxu0 %v904
    %1190 = vmatprep.subr.bf16.mxu0 0
    %1191 = vmatpush1.bf16.msra.mxu0 0
    %1192 = vmatprep.subr.bf16.mxu0 0
    %1193 = vmatpush1.bf16.msra.mxu0 0
    %1194 = vmatprep.subr.bf16.mxu0 0
    %1195 = vmatpush1.bf16.msra.mxu0 0
    %1196 = vmatprep.subr.bf16.mxu0 0
    %1197 = vmatpush1.bf16.msra.mxu0 0
    %1198 = vmatprep.subr.bf16.mxu0 0
    %1199 = vmatpush1.bf16.msra.mxu0 0
    %1200 = vmatprep.subr.bf16.mxu0 0
    %1201 = vmatpush1.bf16.msra.mxu0 0
    %1202 = vmatprep.subr.bf16.mxu0 0
    %1203 = vmatpush1.bf16.msra.mxu0 0
    %1204 = vmatprep.subr.bf16.mxu0 0
    %1205 = vmatpush1.bf16.msra.mxu0 0
    %1206 = vmatprep.subr.bf16.mxu0 0
    %1207 = vmatpush1.bf16.msra.mxu0 0
    %1208 = vmatprep.subr.bf16.mxu0 0
    %1209 = vmatpush1.bf16.msra.mxu0 0
    %1210 = vmatprep.subr.bf16.mxu0 0
    %1211 = vmatpush1.bf16.msra.mxu0 0
    %1212 = vmatprep.subr.bf16.mxu0 0
    %1213 = vmatpush1.bf16.msra.mxu0 0
    %1214 = vmatprep.subr.bf16.mxu0 0
    %1215 = vmatpush1.bf16.msra.mxu0 0
    %1216 = vmatprep.subr.bf16.mxu0 0
    %1217 = vmatpush1.bf16.msra.mxu0 0
    %1218 = vmatprep.mubr.bf16.mxu0 0
    %1219 = vmatmul.mubr.bf16.gmra.mrb[0].mxu0 %v1184
    %v1220 = vpop.f32.mrb[0].mxu0
    %v1221 = vadd.f32 0.0, %v1220
    %v1222 = vpop.f32.mrb[0].mxu0
    %v1223 = vpop.f32.mrb[0].mxu0
    %v1224 = vpop.f32.mrb[0].mxu0
    %1225 = vdwg.mxu0
    %v1226 = vadd.f32 %v876, %v1221
    %v1227 = vmul.f32 %v1226, %v59
    %v1228 = vtanh.pop %v1227
    %v1229 = vmul.f32 %v1228, %v59
    %v1230 = vadd.f32 %v1229, %v60
    %v1231 = vmul.f32 %v1230, %v1172
    %1233 = vrot.lane.b32.xlu0 %v1230, 96
    %v1234 = vpop.permute.xlu0 %1233
    %v1236 = vmul.f32 %v1230, %v1234
    %1238 = vrot.lane.b32.xlu0 %v1236, 96
    %v1239 = vpop.permute.xlu0 %1238
    %v1241 = vadd.f32 %v1231, %v1239
    %v1242 = vtanh.pop %v1241
    %1244 = vrot.lane.b32.xlu0 %v1242, 96
    %v1245 = vpop.permute.xlu0 %1244
    %v1247 = vmul.f32 %v1230, %v1245
    %v1248 = vpack.c.bf16 %v1247, %v1247
    %1250 = vrot.lane.b32.xlu0 %v1248, 32
    %v1251 = vpop.permute.xlu0 %1250
    %v1253 = vsel %vm201, %v1251, 0
    %1255 = vmatprep.subr.bf16.mxu0 0
    %1256 = vmatpush1.bf16.msra.mxu0 %v903
    %1257 = vmatprep.subr.bf16.mxu0 0
    %1258 = vmatpush1.bf16.msra.mxu0 %v904
    %1259 = vmatprep.subr.bf16.mxu0 0
    %1260 = vmatpush1.bf16.msra.mxu0 0
    %1261 = vmatprep.subr.bf16.mxu0 0
    %1262 = vmatpush1.bf16.msra.mxu0 0
    %1263 = vmatprep.subr.bf16.mxu0 0
    %1264 = vmatpush1.bf16.msra.mxu0 0
    %1265 = vmatprep.subr.bf16.mxu0 0
    %1266 = vmatpush1.bf16.msra.mxu0 0
    %1267 = vmatprep.subr.bf16.mxu0 0
    %1268 = vmatpush1.bf16.msra.mxu0 0
    %1269 = vmatprep.subr.bf16.mxu0 0
    %1270 = vmatpush1.bf16.msra.mxu0 0
    %1271 = vmatprep.subr.bf16.mxu0 0
    %1272 = vmatpush1.bf16.msra.mxu0 0
    %1273 = vmatprep.subr.bf16.mxu0 0
    %1274 = vmatpush1.bf16.msra.mxu0 0
    %1275 = vmatprep.subr.bf16.mxu0 0
    %1276 = vmatpush1.bf16.msra.mxu0 0
    %1277 = vmatprep.subr.bf16.mxu0 0
    %1278 = vmatpush1.bf16.msra.mxu0 0
    %1279 = vmatprep.subr.bf16.mxu0 0
    %1280 = vmatpush1.bf16.msra.mxu0 0
    %1281 = vmatprep.subr.bf16.mxu0 0
    %1282 = vmatpush1.bf16.msra.mxu0 0
    %1283 = vmatprep.subr.bf16.mxu0 0
    %1284 = vmatpush1.bf16.msra.mxu0 0
    %1285 = vmatprep.subr.bf16.mxu0 0
    %1286 = vmatpush1.bf16.msra.mxu0 0
    %1287 = vmatprep.mubr.bf16.mxu0 0
    %1288 = vmatmul.mubr.bf16.gmra.mrb[0].mxu0 %v1253
    %v1289 = vpop.f32.mrb[0].mxu0
    %v1290 = vadd.f32 0.0, %v1289
    %v1291 = vpop.f32.mrb[0].mxu0
    %v1292 = vpop.f32.mrb[0].mxu0
    %v1293 = vpop.f32.mrb[0].mxu0
    %1294 = vdwg.mxu0
    %v1295 = vadd.f32 %v879, %v1290
    %v1296 = vmul.f32 %v1295, %v59
    %v1297 = vtanh.pop %v1296
    %v1298 = vmul.f32 %v1297, %v59
    %v1299 = vadd.f32 %v1298, %v60
    %v1300 = vmul.f32 %v1299, %v1241
    %1302 = vrot.lane.b32.xlu0 %v1299, 96
    %v1303 = vpop.permute.xlu0 %1302
    %v1305 = vmul.f32 %v1299, %v1303
    %1307 = vrot.lane.b32.xlu0 %v1305, 96
    %v1308 = vpop.permute.xlu0 %1307
    %v1310 = vadd.f32 %v1300, %v1308
    %v1311 = vtanh.pop %v1310
    %1313 = vrot.lane.b32.xlu0 %v1311, 96
    %v1314 = vpop.permute.xlu0 %1313
    %v1316 = vmul.f32 %v1299, %v1314
    %v1317 = vpack.c.bf16 %v1316, %v1316
    %1319 = vrot.lane.b32.xlu0 %v1317, 32
    %v1320 = vpop.permute.xlu0 %1319
    %v1322 = vsel %vm201, %v1320, 0
    %1324 = vmatprep.subr.bf16.mxu0 0
    %1325 = vmatpush1.bf16.msra.mxu0 %v903
    %1326 = vmatprep.subr.bf16.mxu0 0
    %1327 = vmatpush1.bf16.msra.mxu0 %v904
    %1328 = vmatprep.subr.bf16.mxu0 0
    %1329 = vmatpush1.bf16.msra.mxu0 0
    %1330 = vmatprep.subr.bf16.mxu0 0
    %1331 = vmatpush1.bf16.msra.mxu0 0
    %1332 = vmatprep.subr.bf16.mxu0 0
    %1333 = vmatpush1.bf16.msra.mxu0 0
    %1334 = vmatprep.subr.bf16.mxu0 0
    %1335 = vmatpush1.bf16.msra.mxu0 0
    %1336 = vmatprep.subr.bf16.mxu0 0
    %1337 = vmatpush1.bf16.msra.mxu0 0
    %1338 = vmatprep.subr.bf16.mxu0 0
    %1339 = vmatpush1.bf16.msra.mxu0 0
    %1340 = vmatprep.subr.bf16.mxu0 0
    %1341 = vmatpush1.bf16.msra.mxu0 0
    %1342 = vmatprep.subr.bf16.mxu0 0
    %1343 = vmatpush1.bf16.msra.mxu0 0
    %1344 = vmatprep.subr.bf16.mxu0 0
    %1345 = vmatpush1.bf16.msra.mxu0 0
    %1346 = vmatprep.subr.bf16.mxu0 0
    %1347 = vmatpush1.bf16.msra.mxu0 0
    %1348 = vmatprep.subr.bf16.mxu0 0
    %1349 = vmatpush1.bf16.msra.mxu0 0
    %1350 = vmatprep.subr.bf16.mxu0 0
    %1351 = vmatpush1.bf16.msra.mxu0 0
    %1352 = vmatprep.subr.bf16.mxu0 0
    %1353 = vmatpush1.bf16.msra.mxu0 0
    %1354 = vmatprep.subr.bf16.mxu0 0
    %1355 = vmatpush1.bf16.msra.mxu0 0
    %1356 = vmatprep.mubr.bf16.mxu0 0
    %1357 = vmatmul.mubr.bf16.gmra.mrb[0].mxu0 %v1322
    %v1358 = vpop.f32.mrb[0].mxu0
    %v1359 = vadd.f32 0.0, %v1358
    %v1360 = vpop.f32.mrb[0].mxu0
    %v1361 = vpop.f32.mrb[0].mxu0
    %v1362 = vpop.f32.mrb[0].mxu0
    %1363 = vdwg.mxu0
    %v1364 = vadd.f32 %v884, %v1359
    %v1365 = vmul.f32 %v1364, %v59
    %v1366 = vtanh.pop %v1365
    %v1367 = vmul.f32 %v1366, %v59
    %v1368 = vadd.f32 %v1367, %v60
    %v1369 = vmul.f32 %v1368, %v1310
    %1371 = vrot.lane.b32.xlu0 %v1368, 96
    %v1372 = vpop.permute.xlu0 %1371
    %v1374 = vmul.f32 %v1368, %v1372
    %1376 = vrot.lane.b32.xlu0 %v1374, 96
    %v1377 = vpop.permute.xlu0 %1376
    %v1379 = vadd.f32 %v1369, %v1377
    %v1380 = vtanh.pop %v1379
    %1382 = vrot.lane.b32.xlu0 %v1380, 96
    %v1383 = vpop.permute.xlu0 %1382
    %v1385 = vmul.f32 %v1368, %v1383
    %v1386 = vpack.c.bf16 %v1385, %v1385
    %1388 = vrot.lane.b32.xlu0 %v1386, 32
    %v1389 = vpop.permute.xlu0 %1388
    %v1391 = vsel %vm201, %v1389, 0
    %1393 = vmatprep.subr.bf16.mxu0 0
    %1394 = vmatpush1.bf16.msra.mxu0 %v903
    %1395 = vmatprep.subr.bf16.mxu0 0
    %1396 = vmatpush1.bf16.msra.mxu0 %v904
    %1397 = vmatprep.subr.bf16.mxu0 0
    %1398 = vmatpush1.bf16.msra.mxu0 0
    %1399 = vmatprep.subr.bf16.mxu0 0
    %1400 = vmatpush1.bf16.msra.mxu0 0
    %1401 = vmatprep.subr.bf16.mxu0 0
    %1402 = vmatpush1.bf16.msra.mxu0 0
    %1403 = vmatprep.subr.bf16.mxu0 0
    %1404 = vmatpush1.bf16.msra.mxu0 0
    %1405 = vmatprep.subr.bf16.mxu0 0
    %1406 = vmatpush1.bf16.msra.mxu0 0
    %1407 = vmatprep.subr.bf16.mxu0 0
    %1408 = vmatpush1.bf16.msra.mxu0 0
    %1409 = vmatprep.subr.bf16.mxu0 0
    %1410 = vmatpush1.bf16.msra.mxu0 0
    %1411 = vmatprep.subr.bf16.mxu0 0
    %1412 = vmatpush1.bf16.msra.mxu0 0
    %1413 = vmatprep.subr.bf16.mxu0 0
    %1414 = vmatpush1.bf16.msra.mxu0 0
    %1415 = vmatprep.subr.bf16.mxu0 0
    %1416 = vmatpush1.bf16.msra.mxu0 0
    %1417 = vmatprep.subr.bf16.mxu0 0
    %1418 = vmatpush1.bf16.msra.mxu0 0
    %1419 = vmatprep.subr.bf16.mxu0 0
    %1420 = vmatpush1.bf16.msra.mxu0 0
    %1421 = vmatprep.subr.bf16.mxu0 0
    %1422 = vmatpush1.bf16.msra.mxu0 0
    %1423 = vmatprep.subr.bf16.mxu0 0
    %1424 = vmatpush1.bf16.msra.mxu0 0
    %1425 = vmatprep.mubr.bf16.mxu0 0
    %1426 = vmatmul.mubr.bf16.gmra.mrb[0].mxu0 %v1391
    %v1427 = vpop.f32.mrb[0].mxu0
    %v1428 = vadd.f32 0.0, %v1427
    %v1429 = vpop.f32.mrb[0].mxu0
    %v1430 = vpop.f32.mrb[0].mxu0
    %v1431 = vpop.f32.mrb[0].mxu0
    %1432 = vdwg.mxu0
    %v1433 = vadd.f32 %v887, %v1428
    %v1434 = vmul.f32 %v1433, %v59
    %v1435 = vtanh.pop %v1434
    %v1436 = vmul.f32 %v1435, %v59
    %v1437 = vadd.f32 %v1436, %v60
    %v1438 = vmul.f32 %v1437, %v1379
    %1440 = vrot.lane.b32.xlu0 %v1437, 96
    %v1441 = vpop.permute.xlu0 %1440
    %v1443 = vmul.f32 %v1437, %v1441
    %1445 = vrot.lane.b32.xlu0 %v1443, 96
    %v1446 = vpop.permute.xlu0 %1445
    %v1448 = vadd.f32 %v1438, %v1446
    %v1449 = vtanh.pop %v1448
    %1451 = vrot.lane.b32.xlu0 %v1449, 96
    %v1452 = vpop.permute.xlu0 %1451
    %v1454 = vmul.f32 %v1437, %v1452
    %v1455 = vld [vmem:[%s9] sm:$0xff]
    %v1456 = vld [vmem:[%s9 + $0x8] sm:$0xff]
    %v1457 = vld [vmem:[%s9 + $0x10] sm:$0xff]
    %v1458 = vld [vmem:[%s9 + $0x18] sm:$0xff]
    %v1459 = vld [vmem:[%s10] sm:$0x1]
    %v1461 = vlaneseq
    %v1462 = vshrl.u32 %v1461, 7
    %v1463 = vsub.s32 0, %v1462
    %v1464 = vrot.slane %v1459, %v1463
    %1467 = vrot.lane.b32.xlu0 %v1454, 32
    %v1468 = vpop.permute.xlu0 %1467
    %v1469 = vsel %vm201, %v1468, 0
    %1471 = vmatprep.subr.mxu0 0.0
    %1472 = vmatpush1.msra.mxu0 %v1455
    %1473 = vmatprep.subr.mxu0 0.0
    %1474 = vmatpush1.msra.mxu0 %v1456
    %1475 = vmatprep.subr.mxu0 0.0
    %1476 = vmatpush1.msra.mxu0 %v1457
    %1477 = vmatprep.subr.mxu0 0.0
    %1478 = vmatpush1.msra.mxu0 %v1458
    %1479 = vmatprep.subr.mxu0 0.0
    %1480 = vmatpush1.msra.mxu0 0.0
    %1481 = vmatprep.subr.mxu0 0.0
    %1482 = vmatpush1.msra.mxu0 0.0
    %1483 = vmatprep.subr.mxu0 0.0
    %1484 = vmatpush1.msra.mxu0 0.0
    %1485 = vmatprep.subr.mxu0 0.0
    %1486 = vmatpush1.msra.mxu0 0.0
    %1487 = vmatprep.subr.mxu0 0.0
    %1488 = vmatpush1.msra.mxu0 0.0
    %1489 = vmatprep.subr.mxu0 0.0
    %1490 = vmatpush1.msra.mxu0 0.0
    %1491 = vmatprep.subr.mxu0 0.0
    %1492 = vmatpush1.msra.mxu0 0.0
    %1493 = vmatprep.subr.mxu0 0.0
    %1494 = vmatpush1.msra.mxu0 0.0
    %1495 = vmatprep.subr.mxu0 0.0
    %1496 = vmatpush1.msra.mxu0 0.0
    %1497 = vmatprep.subr.mxu0 0.0
    %1498 = vmatpush1.msra.mxu0 0.0
    %1499 = vmatprep.subr.mxu0 0.0
    %1500 = vmatpush1.msra.mxu0 0.0
    %1501 = vmatprep.subr.mxu0 0.0
    %1502 = vmatpush1.msra.mxu0 0.0
    %1503 = vmatprep.subr.mxu0 0.0
    %1504 = vmatpush1.msra.mxu0 0.0
    %1505 = vmatprep.subr.mxu0 0.0
    %1506 = vmatpush1.msra.mxu0 0.0
    %1507 = vmatprep.subr.mxu0 0.0
    %1508 = vmatpush1.msra.mxu0 0.0
    %1509 = vmatprep.subr.mxu0 0.0
    %1510 = vmatpush1.msra.mxu0 0.0
    %1511 = vmatprep.subr.mxu0 0.0
    %1512 = vmatpush1.msra.mxu0 0.0
    %1513 = vmatprep.subr.mxu0 0.0
    %1514 = vmatpush1.msra.mxu0 0.0
    %1515 = vmatprep.subr.mxu0 0.0
    %1516 = vmatpush1.msra.mxu0 0.0
    %1517 = vmatprep.subr.mxu0 0.0
    %1518 = vmatpush1.msra.mxu0 0.0
    %1519 = vmatprep.subr.mxu0 0.0
    %1520 = vmatpush1.msra.mxu0 0.0
    %1521 = vmatprep.subr.mxu0 0.0
    %1522 = vmatpush1.msra.mxu0 0.0
    %1523 = vmatprep.subr.mxu0 0.0
    %1524 = vmatpush1.msra.mxu0 0.0
    %1525 = vmatprep.subr.mxu0 0.0
    %1526 = vmatpush1.msra.mxu0 0.0
    %1527 = vmatprep.subr.mxu0 0.0
    %1528 = vmatpush1.msra.mxu0 0.0
    %1529 = vmatprep.subr.mxu0 0.0
    %1530 = vmatpush1.msra.mxu0 0.0
    %1531 = vmatprep.subr.mxu0 0.0
    %1532 = vmatpush1.msra.mxu0 0.0
    %1533 = vmatprep.subr.mxu0 0.0
    %1534 = vmatpush1.msra.mxu0 0.0
    %1535 = vmatprep.mubr.f32.mxu0 0.0
    %1536 = vmatmul.mubr.f32.gmra.mrb[0].mxu0 %v1469
    %v1537 = vpop.f32.mrb[0].mxu0
    %v1538 = vadd.f32 %v1464, %v1537
    %v1539 = vpop.f32.mrb[0].mxu0
    %1540 = vdwg.mxu0
    %v1541 = vmax.f32 %v1538, 0.0
    %vm1542 = vcmask 64512
    %1543 = vst.msk [vmem:[#allocation6] sm:$0xff] %vm1542, %v1541
    // Predicated region
    $region50: #{tpu_custom_call.1} parent=1 // pred_check
      _
    $region51: #{tpu_custom_call.1} parent=1 // pred_check_branch
      %1545 = sbr.rel (0) target = $region53
    $region52: #{tpu_custom_call.1} parent=1 // pred_region
      %s1547 = ssub.s32 128, 128
      %1548 = vsyncadd [#allocation5], %s1547
      %s1550 = sshll.u32 [#allocation6], 4
      %s1551 = int_to_ptr.vmem [resolvable:$true] %s1550
      %1553 = dma.vmem_to_hbm [thread:$0]  %s1551, 128, %s11, [#allocation5]
    $region53: #{tpu_custom_call.1} parent=1 // pred_fallthru
      _
    // Predicated region
    $region54: #{tpu_custom_call.1} parent=1 // pred_check
      _
    $region55: #{tpu_custom_call.1} parent=1 // pred_check_branch
      %1555 = sbr.rel (0) target = $region57
    $region56: #{tpu_custom_call.1} parent=1 // pred_region
      %1556 = dma.done [#allocation5], 128
    $region57: #{tpu_custom_call.1} parent=1 // pred_fallthru
      _
    %1557 = vsyncpa [#allocation4], 1
    %1558 = vsyncpa [#allocation5], 1

</llo_original>
